<compile_context>
chip_gen: v6e
topology: v6e:2x2x1
jax: 0.10.0
libtpu: 0.0.40
codegen_flags: <defaults>
</compile_context>

<pallas_src>
import functools
import math

import jax
import jax.numpy as jnp
from jax.experimental import pallas as pl
from jax.experimental.pallas import tpu as pltpu


# ---------------------------------------------------------------------------
# Hardware / tiling helpers
# ---------------------------------------------------------------------------

def _vmem_capacity_bytes():
    """Per-core VMEM capacity; conservative (v7x) default if the query fails."""
    default = 64 * 1024 * 1024
    try:
        info = pltpu.get_tpu_info()
    except Exception:
        return default
    for name in ("vmem_capacity_bytes", "vmem_bytes", "vmem_size_bytes"):
        cap = getattr(info, name, None)
        if cap:
            return int(cap)
    return default


def _pick_tile(n, max_tile):
    """Largest tile <= max_tile that is a multiple of 8 and divides n (or n)."""
    if n <= max_tile:
        return n
    for d in range(min(int(max_tile), n), 7, -1):
        if n % d == 0 and d % 8 == 0:
            return d
    # TODO(synk): pad/mask ragged sequence lengths under pl.when instead of
    # falling back to a full-length tile (can exceed the VMEM budget).
    return n


def _flash_vmem_bytes(tq, tk, H, itemsize):
    io = 2 * (tq + 2 * tk) * H * itemsize        # double-buffered q/k/v input tiles
    out = 2 * tq * H * itemsize                  # double-buffered output tile
    scr = tq * H * 4 + 2 * tq * 4                # f32 accumulator + running max/sum
    tmp = 6 * tq * tk * 4                        # f32 score-matrix temporaries
    return io + out + scr + tmp


def _select_flash_tiles(B, S, H, itemsize, vmem_budget):
    """Asymmetric tiles: moderate tq (bounds scratch + (tq,tk) score temp),
    larger tk (fewer kv steps -> less fixed per-step / VPU rescale overhead)."""
    tq = tk = None
    for tq_c in (256, 128, 64, 32, 16, 8):
        for tk_c in (1024, 512, 256, 128, 64, 32, 16, 8):
            tq_try = _pick_tile(S, tq_c)
            tk_try = _pick_tile(S, tk_c)
            if _flash_vmem_bytes(tq_try, tk_try, H, itemsize) <= vmem_budget:
                tq, tk = tq_try, tk_try
                break
        if tq is not None:
            break
    if tq is None:
        tq = _pick_tile(S, 8)
        tk = _pick_tile(S, 8)
    # v7x megacore: make sure there are at least two parallel grid units.
    if B * (S // tq) < 2:
        smaller = _pick_tile(S, max(8, tq // 2))
        if smaller < tq:
            tq = smaller
    return tq, tk


# ---------------------------------------------------------------------------
# Pass 1: Q/K/V projection (one sweep over the sequence, weights read once)
# ---------------------------------------------------------------------------

def _proj_kernel(x_ref, wq_ref, bq_ref, wk_ref, bk_ref, wv_ref, bv_ref,
                 q_ref, k_ref, v_ref):
    x = x_ref[0]                                            # (ts, H)

    def proj(w_ref, b_ref):
        y = jnp.dot(x, w_ref[...], preferred_element_type=jnp.float32)
        return y + b_ref[...].astype(jnp.float32)

    q_ref[0] = proj(wq_ref, bq_ref).astype(q_ref.dtype)     # scale already folded
    k_ref[0] = proj(wk_ref, bk_ref).astype(k_ref.dtype)
    v_ref[0] = proj(wv_ref, bv_ref).astype(v_ref.dtype)


def _project_qkv_call(x, wq_t, bq2, wk_t, bk2, wv_t, bv2, ts, vmem_limit,
                      single_buffer_weights):
    B, S, H = x.shape
    dt = x.dtype
    itemsize = jnp.dtype(dt).itemsize
    grid = (B, S // ts)

    def const_spec(shape):
        if single_buffer_weights:
            return pl.BlockSpec(shape, lambda b, si: (0,) * len(shape),
                                pipeline_mode=pl.Buffered(1))
        return pl.BlockSpec(shape, lambda b, si: (0,) * len(shape))

    seq_spec = pl.BlockSpec((1, ts, H), lambda b, si: (b, si, 0))

    cost = pl.CostEstimate(
        flops=int(2 * B * S * H * H * 3),
        transcendentals=0,
        bytes_accessed=int(itemsize * (4 * B * S * H + 3 * (H * H + H))),
    )

    return pl.pallas_call(
        _proj_kernel,
        out_shape=(jax.ShapeDtypeStruct((B, S, H), dt),
                   jax.ShapeDtypeStruct((B, S, H), dt),
                   jax.ShapeDtypeStruct((B, S, H), dt)),
        grid_spec=pltpu.PrefetchScalarGridSpec(
            num_scalar_prefetch=0,
            grid=grid,
            in_specs=[
                seq_spec,                      # x tile
                const_spec((H, H)),            # Wq (transposed, scale folded)
                const_spec((1, H)),            # bq (scale folded)
                const_spec((H, H)),            # Wk (transposed)
                const_spec((1, H)),            # bk
                const_spec((H, H)),            # Wv (transposed)
                const_spec((1, H)),            # bv
            ],
            out_specs=[seq_spec, seq_spec, seq_spec],
        ),
        compiler_params=pltpu.CompilerParams(
            dimension_semantics=("parallel", "parallel"),
            vmem_limit_bytes=int(vmem_limit)),
        cost_estimate=cost,
    )(x, wq_t, bq2, wk_t, bk2, wv_t, bv2)


def _project_qkv(x, wq_t, bq2, wk_t, bk2, wv_t, bv2, ts, vmem_limit):
    try:
        return _project_qkv_call(x, wq_t, bq2, wk_t, bk2, wv_t, bv2, ts,
                                 vmem_limit, single_buffer_weights=True)
    except Exception:
        # Fallback if single-buffered constants (pl.Buffered(1)) are rejected.
        return _project_qkv_call(x, wq_t, bq2, wk_t, bk2, wv_t, bv2, ts,
                                 vmem_limit, single_buffer_weights=False)


# ---------------------------------------------------------------------------
# Pass 2: flash attention over pre-projected q/k/v
# ---------------------------------------------------------------------------

def _flash_kernel(q_ref, k_ref, v_ref, o_ref, m_sc, l_sc, acc_sc, *, approx_recip):
    ki = pl.program_id(2)

    @pl.when(ki == 0)
    def _init():
        m_sc[...] = jnp.full_like(m_sc, -jnp.inf)
        l_sc[...] = jnp.zeros_like(l_sc)
        acc_sc[...] = jnp.zeros_like(acc_sc)

    q = q_ref[0]                                            # (tq, H), scale folded
    k = k_ref[0]                                            # (tk, H)
    v = v_ref[0]                                            # (tk, H)

    # scores = q @ k^T, contracting the last dims so K is never transposed here.
    # TODO(synk): on v5e check the bundle for an inserted vxpose of the k tile;
    # if present, emit K pre-transposed from the projection pass instead.
    s = jax.lax.dot_general(
        q, k, dimension_numbers=(((1,), (1,)), ((), ())),
        preferred_element_type=jnp.float32)                 # (tq, tk)

    # Online (flash) softmax update, all in f32.
    m_prev = m_sc[...]
    m_new = jnp.maximum(m_prev, jnp.max(s, axis=-1, keepdims=True))
    alpha = jnp.exp(m_prev - m_new)
    p = jnp.exp(s - m_new)
    l_sc[...] = alpha * l_sc[...] + jnp.sum(p, axis=-1, keepdims=True)
    acc_sc[...] = alpha * acc_sc[...] + jnp.dot(
        p.astype(v.dtype), v, preferred_element_type=jnp.float32)
    m_sc[...] = m_new

    @pl.when(ki == pl.num_programs(2) - 1)
    def _finalize():
        inv_l = pl.reciprocal(l_sc[...], approx=approx_recip)
        o_ref[0] = (acc_sc[...] * inv_l).astype(o_ref.dtype)


def _flash_attention(q, k, v, tq, tk, vmem_limit, approx_recip):
    B, S, H = q.shape
    dt = q.dtype
    itemsize = jnp.dtype(dt).itemsize
    grid = (B, S // tq, S // tk)
    n_qt = S // tq

    kernel = functools.partial(_flash_kernel, approx_recip=approx_recip)

    cost = pl.CostEstimate(
        flops=int(4 * B * S * S * H),
        transcendentals=int(B * S * S),
        bytes_accessed=int(itemsize * (B * S * H * (2 + 2 * n_qt))),
    )

    return pl.pallas_call(
        kernel,
        out_shape=jax.ShapeDtypeStruct((B, S, H), dt),
        grid_spec=pltpu.PrefetchScalarGridSpec(
            num_scalar_prefetch=0,
            grid=grid,
            in_specs=[
                pl.BlockSpec((1, tq, H), lambda b, qi, ki: (b, qi, 0)),  # q tile
                pl.BlockSpec((1, tk, H), lambda b, qi, ki: (b, ki, 0)),  # k tile
                pl.BlockSpec((1, tk, H), lambda b, qi, ki: (b, ki, 0)),  # v tile
            ],
            out_specs=pl.BlockSpec((1, tq, H), lambda b, qi, ki: (b, qi, 0)),
            scratch_shapes=[
                pltpu.VMEM((tq, 1), jnp.float32),   # running max
                pltpu.VMEM((tq, 1), jnp.float32),   # running sum
                pltpu.VMEM((tq, H), jnp.float32),   # output accumulator
            ],
        ),
        compiler_params=pltpu.CompilerParams(
            dimension_semantics=("parallel", "parallel", "arbitrary"),
            vmem_limit_bytes=int(vmem_limit)),
        cost_estimate=cost,
    )(q, k, v)


# ---------------------------------------------------------------------------
# Wrapper
# ---------------------------------------------------------------------------

def attention_forward(x, wq, bq, wk, bk, wv, bv):
    """x: (B, S, H); w*: (H, H) PyTorch [out, in]; b*: (H,). Returns (B, S, H)."""
    B, S, H = x.shape
    dt = x.dtype
    itemsize = jnp.dtype(dt).itemsize
    scale = 1.0 / math.sqrt(H)

    # Constant-fold once in the wrapper: transpose to (in, out), fold 1/sqrt(H)
    # into the query projection, cast to the compute dtype.
    wq_t = (wq.T.astype(jnp.float32) * scale).astype(dt)
    bq2 = (bq.astype(jnp.float32) * scale).reshape(1, H).astype(dt)
    wk_t = wk.T.astype(dt)
    bk2 = bk.reshape(1, H).astype(dt)
    wv_t = wv.T.astype(dt)
    bv2 = bv.reshape(1, H).astype(dt)

    vmem_cap = _vmem_capacity_bytes()
    vmem_budget = int(vmem_cap * 0.6)   # headroom for compiler-internal scratch

    # --- pass 1: projection tile + limit -----------------------------------
    # TODO(synk): for very large H (weights alone > VMEM budget) tile the
    # projection over the output-H dimension as well.
    proj_w_bytes = 2 * 3 * (H * H + H) * itemsize          # worst case (double buf)
    per_row = 8 * H * itemsize                              # 2x x-tile + 6x out-tiles
    ts_cap = max(8, min(1024, max(vmem_budget - proj_w_bytes, 8 * per_row) // per_row))
    ts = _pick_tile(S, ts_cap)
    proj_limit = min(vmem_cap * 7 // 8,
                     max(2 * (proj_w_bytes + ts * per_row), 32 * 1024 * 1024))

    # --- pass 2: flash tiles + limit ----------------------------------------
    tq, tk = _select_flash_tiles(B, S, H, itemsize, vmem_budget)
    flash_limit = min(vmem_cap * 7 // 8,
                      max(2 * _flash_vmem_bytes(tq, tk, H, itemsize),
                          32 * 1024 * 1024))

    q, k, v = _project_qkv(x, wq_t, bq2, wk_t, bk2, wv_t, bv2, ts, proj_limit)
    approx_recip = (dt == jnp.bfloat16)
    return _flash_attention(q, k, v, tq, tk, flash_limit, approx_recip)


def _reference(x, wq, bq, wk, bk, wv, bv):
    q = x @ wq.T + bq
    k = x @ wk.T + bk
    v = x @ wv.T + bv
    scores = jnp.einsum("bqh,bkh->bqk", q, k) / math.sqrt(x.shape[-1])
    attn = jax.nn.softmax(scores, axis=-1)
    return jnp.einsum("bqk,bkh->bqh", attn, v)


if __name__ == "__main__":
    B, S, H = 2, 8, 32
    key = jax.random.PRNGKey(0)
    kx, kq, kbq, kk, kbk, kv_, kbv = jax.random.split(key, 7)

    # Deterministic synthetic parameters (PyTorch Linear shapes: W=(H,H), b=(H,))
    bound = 1.0 / math.sqrt(H)
    x = jax.random.normal(kx, (B, S, H), dtype=jnp.float32)
    wq = jax.random.uniform(kq, (H, H), minval=-bound, maxval=bound, dtype=jnp.float32)
    bq = jax.random.uniform(kbq, (H,), minval=-bound, maxval=bound, dtype=jnp.float32)
    wk = jax.random.uniform(kk, (H, H), minval=-bound, maxval=bound, dtype=jnp.float32)
    bk = jax.random.uniform(kbk, (H,), minval=-bound, maxval=bound, dtype=jnp.float32)
    wv = jax.random.uniform(kv_, (H, H), minval=-bound, maxval=bound, dtype=jnp.float32)
    bv = jax.random.uniform(kbv, (H,), minval=-bound, maxval=bound, dtype=jnp.float32)

    ref = _reference(x, wq, bq, wk, bk, wv, bv)

    # f32 path: tight check.
    out = attention_forward(x, wq, bq, wk, bk, wv, bv)
    out = jax.block_until_ready(out)
    assert out.shape == (B, S, H)
    assert jnp.allclose(out, ref, atol=1e-5, rtol=1e-5)

    # bf16 fast path (bf16 MXU operands, f32 accumulation): loose check.
    out_bf16 = attention_forward(x.astype(jnp.bfloat16), wq, bq, wk, bk, wv, bv)
    out_bf16 = jax.block_until_ready(out_bf16)
    assert out_bf16.dtype == jnp.bfloat16
    assert jnp.allclose(out_bf16.astype(jnp.float32), ref, atol=1e-1, rtol=1e-1)

    print("KERNEL_OK")
</pallas_src>

<mosaic_0001>
module attributes {stable_mosaic.version = 11 : i64} {
  func.func @_proj_kernel(%arg0: i32, %arg1: i32, %arg2: memref<1x8x32xf32, #tpu.memory_space<vmem>>, %arg3: memref<32x32xf32, #tpu.memory_space<vmem>>, %arg4: memref<1x32xf32, #tpu.memory_space<vmem>>, %arg5: memref<32x32xf32, #tpu.memory_space<vmem>>, %arg6: memref<1x32xf32, #tpu.memory_space<vmem>>, %arg7: memref<32x32xf32, #tpu.memory_space<vmem>>, %arg8: memref<1x32xf32, #tpu.memory_space<vmem>>, %arg9: memref<1x8x32xf32, #tpu.memory_space<vmem>>, %arg10: memref<1x8x32xf32, #tpu.memory_space<vmem>>, %arg11: memref<1x8x32xf32, #tpu.memory_space<vmem>>) attributes {dimension_semantics = [#tpu.dimension_semantics<parallel>, #tpu.dimension_semantics<parallel>], iteration_bounds = array<i64: 2, 1>, scalar_prefetch = 0 : i64, scratch_operands = 0 : i64, tpu.core_type = #tpu.core_type<tc>, window_params = [{transform_indices = @transform_0, window_bounds = array<i64: 1, 8, 32>}, {pipeline_mode = #tpu.pipeline_mode<synchronous>, transform_indices = @transform_1, window_bounds = array<i64: 32, 32>}, {pipeline_mode = #tpu.pipeline_mode<synchronous>, transform_indices = @transform_2, window_bounds = array<i64: 1, 32>}, {pipeline_mode = #tpu.pipeline_mode<synchronous>, transform_indices = @transform_3, window_bounds = array<i64: 32, 32>}, {pipeline_mode = #tpu.pipeline_mode<synchronous>, transform_indices = @transform_4, window_bounds = array<i64: 1, 32>}, {pipeline_mode = #tpu.pipeline_mode<synchronous>, transform_indices = @transform_5, window_bounds = array<i64: 32, 32>}, {pipeline_mode = #tpu.pipeline_mode<synchronous>, transform_indices = @transform_6, window_bounds = array<i64: 1, 32>}, {transform_indices = @transform_7, window_bounds = array<i64: 1, 8, 32>}, {transform_indices = @transform_8, window_bounds = array<i64: 1, 8, 32>}, {transform_indices = @transform_9, window_bounds = array<i64: 1, 8, 32>}]} {
    %c0 = arith.constant 0 : index
    %c0_0 = arith.constant 0 : index
    %c0_1 = arith.constant 0 : index
    %0 = vector.load %arg2[%c0, %c0_0, %c0_1] : memref<1x8x32xf32, #tpu.memory_space<vmem>>, vector<1x8x32xf32>
    %1 = vector.shape_cast %0 : vector<1x8x32xf32> to vector<8x32xf32>
    %c0_2 = arith.constant 0 : index
    %c0_3 = arith.constant 0 : index
    %2 = vector.load %arg3[%c0_2, %c0_3] : memref<32x32xf32, #tpu.memory_space<vmem>>, vector<32x32xf32>
    %cst = arith.constant dense<0.000000e+00> : vector<8x32xf32>
    %3 = tpu.matmul %1, %2, %cst {dimension_numbers = #tpu.dot_dimension_numbers<[1], [0], [0], [1], [0, 0, 1, 1], [], []>} : vector<8x32xf32>, vector<32x32xf32>, vector<8x32xf32> -> vector<8x32xf32>
    %c0_4 = arith.constant 0 : index
    %c0_5 = arith.constant 0 : index
    %4 = vector.load %arg4[%c0_4, %c0_5] : memref<1x32xf32, #tpu.memory_space<vmem>>, vector<1x32xf32>
    %5 = vector.broadcast %4 : vector<1x32xf32> to vector<8x32xf32>
    %6 = arith.addf %3, %5 : vector<8x32xf32>
    %c0_6 = arith.constant 0 : index
    %c0_7 = arith.constant 0 : index
    %c0_8 = arith.constant 0 : index
    %7 = vector.load %arg9[%c0_6, %c0_7, %c0_8] : memref<1x8x32xf32, #tpu.memory_space<vmem>>, vector<1x8x32xf32>
    %8 = vector.shape_cast %7 : vector<1x8x32xf32> to vector<8x32xf32>
    %9 = vector.shape_cast %6 : vector<8x32xf32> to vector<1x8x32xf32>
    tpu.vector_store %arg9[%c0_6, %c0_7, %c0_8], %9 {strides = array<i32>} : memref<1x8x32xf32, #tpu.memory_space<vmem>>, vector<1x8x32xf32>,
    %c0_9 = arith.constant 0 : index
    %c0_10 = arith.constant 0 : index
    %10 = vector.load %arg5[%c0_9, %c0_10] : memref<32x32xf32, #tpu.memory_space<vmem>>, vector<32x32xf32>
    %cst_11 = arith.constant dense<0.000000e+00> : vector<8x32xf32>
    %11 = tpu.matmul %1, %10, %cst_11 {dimension_numbers = #tpu.dot_dimension_numbers<[1], [0], [0], [1], [0, 0, 1, 1], [], []>} : vector<8x32xf32>, vector<32x32xf32>, vector<8x32xf32> -> vector<8x32xf32>
    %c0_12 = arith.constant 0 : index
    %c0_13 = arith.constant 0 : index
    %12 = vector.load %arg6[%c0_12, %c0_13] : memref<1x32xf32, #tpu.memory_space<vmem>>, vector<1x32xf32>
    %13 = vector.broadcast %12 : vector<1x32xf32> to vector<8x32xf32>
    %14 = arith.addf %11, %13 : vector<8x32xf32>
    %c0_14 = arith.constant 0 : index
    %c0_15 = arith.constant 0 : index
    %c0_16 = arith.constant 0 : index
    %15 = vector.load %arg10[%c0_14, %c0_15, %c0_16] : memref<1x8x32xf32, #tpu.memory_space<vmem>>, vector<1x8x32xf32>
    %16 = vector.shape_cast %15 : vector<1x8x32xf32> to vector<8x32xf32>
    %17 = vector.shape_cast %14 : vector<8x32xf32> to vector<1x8x32xf32>
    tpu.vector_store %arg10[%c0_14, %c0_15, %c0_16], %17 {strides = array<i32>} : memref<1x8x32xf32, #tpu.memory_space<vmem>>, vector<1x8x32xf32>,
    %c0_17 = arith.constant 0 : index
    %c0_18 = arith.constant 0 : index
    %18 = vector.load %arg7[%c0_17, %c0_18] : memref<32x32xf32, #tpu.memory_space<vmem>>, vector<32x32xf32>
    %cst_19 = arith.constant dense<0.000000e+00> : vector<8x32xf32>
    %19 = tpu.matmul %1, %18, %cst_19 {dimension_numbers = #tpu.dot_dimension_numbers<[1], [0], [0], [1], [0, 0, 1, 1], [], []>} : vector<8x32xf32>, vector<32x32xf32>, vector<8x32xf32> -> vector<8x32xf32>
    %c0_20 = arith.constant 0 : index
    %c0_21 = arith.constant 0 : index
    %20 = vector.load %arg8[%c0_20, %c0_21] : memref<1x32xf32, #tpu.memory_space<vmem>>, vector<1x32xf32>
    %21 = vector.broadcast %20 : vector<1x32xf32> to vector<8x32xf32>
    %22 = arith.addf %19, %21 : vector<8x32xf32>
    %c0_22 = arith.constant 0 : index
    %c0_23 = arith.constant 0 : index
    %c0_24 = arith.constant 0 : index
    %23 = vector.load %arg11[%c0_22, %c0_23, %c0_24] : memref<1x8x32xf32, #tpu.memory_space<vmem>>, vector<1x8x32xf32>
    %24 = vector.shape_cast %23 : vector<1x8x32xf32> to vector<8x32xf32>
    %25 = vector.shape_cast %22 : vector<8x32xf32> to vector<1x8x32xf32>
    tpu.vector_store %arg11[%c0_22, %c0_23, %c0_24], %25 {strides = array<i32>} : memref<1x8x32xf32, #tpu.memory_space<vmem>>, vector<1x8x32xf32>,
    return
  }
  func.func @transform_0(%arg0: i32, %arg1: i32) -> (i32, i32, i32) {
    %c0_i32 = arith.constant 0 : i32
    %c0_i32_0 = arith.constant 0 : i32
    return %arg0, %arg1, %c0_i32 : i32, i32, i32
  }
  func.func @transform_1(%arg0: i32, %arg1: i32) -> (i32, i32) {
    %c0_i32 = arith.constant 0 : i32
    %c0_i32_0 = arith.constant 0 : i32
    %c0_i32_1 = arith.constant 0 : i32
    return %c0_i32, %c0_i32_0 : i32, i32
  }
  func.func @transform_2(%arg0: i32, %arg1: i32) -> (i32, i32) {
    %c0_i32 = arith.constant 0 : i32
    %c0_i32_0 = arith.constant 0 : i32
    %c0_i32_1 = arith.constant 0 : i32
    return %c0_i32, %c0_i32_0 : i32, i32
  }
  func.func @transform_3(%arg0: i32, %arg1: i32) -> (i32, i32) {
    %c0_i32 = arith.constant 0 : i32
    %c0_i32_0 = arith.constant 0 : i32
    %c0_i32_1 = arith.constant 0 : i32
    return %c0_i32, %c0_i32_0 : i32, i32
  }
  func.func @transform_4(%arg0: i32, %arg1: i32) -> (i32, i32) {
    %c0_i32 = arith.constant 0 : i32
    %c0_i32_0 = arith.constant 0 : i32
    %c0_i32_1 = arith.constant 0 : i32
    return %c0_i32, %c0_i32_0 : i32, i32
  }
  func.func @transform_5(%arg0: i32, %arg1: i32) -> (i32, i32) {
    %c0_i32 = arith.constant 0 : i32
    %c0_i32_0 = arith.constant 0 : i32
    %c0_i32_1 = arith.constant 0 : i32
    return %c0_i32, %c0_i32_0 : i32, i32
  }
  func.func @transform_6(%arg0: i32, %arg1: i32) -> (i32, i32) {
    %c0_i32 = arith.constant 0 : i32
    %c0_i32_0 = arith.constant 0 : i32
    %c0_i32_1 = arith.constant 0 : i32
    return %c0_i32, %c0_i32_0 : i32, i32
  }
  func.func @transform_7(%arg0: i32, %arg1: i32) -> (i32, i32, i32) {
    %c0_i32 = arith.constant 0 : i32
    %c0_i32_0 = arith.constant 0 : i32
    return %arg0, %arg1, %c0_i32 : i32, i32, i32
  }
  func.func @transform_8(%arg0: i32, %arg1: i32) -> (i32, i32, i32) {
    %c0_i32 = arith.constant 0 : i32
    %c0_i32_0 = arith.constant 0 : i32
    return %arg0, %arg1, %c0_i32 : i32, i32, i32
  }
  func.func @transform_9(%arg0: i32, %arg1: i32) -> (i32, i32, i32) {
    %c0_i32 = arith.constant 0 : i32
    %c0_i32_0 = arith.constant 0 : i32
    return %arg0, %arg1, %c0_i32 : i32, i32, i32
  }
}

module attributes {stable_mosaic.version = 11 : i64} {
  func.func @_proj_kernel(%arg0: i32, %arg1: i32, %arg2: memref<1x8x32xf32, #tpu.memory_space<vmem>>, %arg3: memref<32x32xf32, #tpu.memory_space<vmem>>, %arg4: memref<1x32xf32, #tpu.memory_space<vmem>>, %arg5: memref<32x32xf32, #tpu.memory_space<vmem>>, %arg6: memref<1x32xf32, #tpu.memory_space<vmem>>, %arg7: memref<32x32xf32, #tpu.memory_space<vmem>>, %arg8: memref<1x32xf32, #tpu.memory_space<vmem>>, %arg9: memref<1x8x32xf32, #tpu.memory_space<vmem>>, %arg10: memref<1x8x32xf32, #tpu.memory_space<vmem>>, %arg11: memref<1x8x32xf32, #tpu.memory_space<vmem>>) attributes {dimension_semantics = [#tpu.dimension_semantics<parallel>, #tpu.dimension_semantics<parallel>], iteration_bounds = array<i64: 2, 1>, scalar_prefetch = 0 : i64, scratch_operands = 0 : i64, tpu.core_type = #tpu.core_type<tc>, window_params = [{transform_indices = @transform_0, window_bounds = array<i64: 1, 8, 32>}, {pipeline_mode = #tpu.pipeline_mode<synchronous>, transform_indices = @transform_1, window_bounds = array<i64: 32, 32>}, {pipeline_mode = #tpu.pipeline_mode<synchronous>, transform_indices = @transform_2, window_bounds = array<i64: 1, 32>}, {pipeline_mode = #tpu.pipeline_mode<synchronous>, transform_indices = @transform_3, window_bounds = array<i64: 32, 32>}, {pipeline_mode = #tpu.pipeline_mode<synchronous>, transform_indices = @transform_4, window_bounds = array<i64: 1, 32>}, {pipeline_mode = #tpu.pipeline_mode<synchronous>, transform_indices = @transform_5, window_bounds = array<i64: 32, 32>}, {pipeline_mode = #tpu.pipeline_mode<synchronous>, transform_indices = @transform_6, window_bounds = array<i64: 1, 32>}, {transform_indices = @transform_7, window_bounds = array<i64: 1, 8, 32>}, {transform_indices = @transform_8, window_bounds = array<i64: 1, 8, 32>}, {transform_indices = @transform_9, window_bounds = array<i64: 1, 8, 32>}]} {
    %c0 = arith.constant 0 : index
    %c0_0 = arith.constant 0 : index
    %c0_1 = arith.constant 0 : index
    %0 = vector.load %arg2[%c0, %c0_0, %c0_1] : memref<1x8x32xf32, #tpu.memory_space<vmem>>, vector<1x8x32xf32>
    %1 = vector.shape_cast %0 : vector<1x8x32xf32> to vector<8x32xf32>
    %c0_2 = arith.constant 0 : index
    %c0_3 = arith.constant 0 : index
    %2 = vector.load %arg3[%c0_2, %c0_3] : memref<32x32xf32, #tpu.memory_space<vmem>>, vector<32x32xf32>
    %cst = arith.constant dense<0.000000e+00> : vector<8x32xf32>
    %3 = tpu.matmul %1, %2, %cst {dimension_numbers = #tpu.dot_dimension_numbers<[1], [0], [0], [1], [0, 0, 1, 1], [], []>} : vector<8x32xf32>, vector<32x32xf32>, vector<8x32xf32> -> vector<8x32xf32>
    %c0_4 = arith.constant 0 : index
    %c0_5 = arith.constant 0 : index
    %4 = vector.load %arg4[%c0_4, %c0_5] : memref<1x32xf32, #tpu.memory_space<vmem>>, vector<1x32xf32>
    %5 = vector.broadcast %4 : vector<1x32xf32> to vector<8x32xf32>
    %6 = arith.addf %3, %5 : vector<8x32xf32>
    %c0_6 = arith.constant 0 : index
    %c0_7 = arith.constant 0 : index
    %c0_8 = arith.constant 0 : index
    %7 = vector.load %arg9[%c0_6, %c0_7, %c0_8] : memref<1x8x32xf32, #tpu.memory_space<vmem>>, vector<1x8x32xf32>
    %8 = vector.shape_cast %7 : vector<1x8x32xf32> to vector<8x32xf32>
    %9 = vector.shape_cast %6 : vector<8x32xf32> to vector<1x8x32xf32>
    tpu.vector_store %arg9[%c0_6, %c0_7, %c0_8], %9 {strides = array<i32>} : memref<1x8x32xf32, #tpu.memory_space<vmem>>, vector<1x8x32xf32>,
    %c0_9 = arith.constant 0 : index
    %c0_10 = arith.constant 0 : index
    %10 = vector.load %arg5[%c0_9, %c0_10] : memref<32x32xf32, #tpu.memory_space<vmem>>, vector<32x32xf32>
    %cst_11 = arith.constant dense<0.000000e+00> : vector<8x32xf32>
    %11 = tpu.matmul %1, %10, %cst_11 {dimension_numbers = #tpu.dot_dimension_numbers<[1], [0], [0], [1], [0, 0, 1, 1], [], []>} : vector<8x32xf32>, vector<32x32xf32>, vector<8x32xf32> -> vector<8x32xf32>
    %c0_12 = arith.constant 0 : index
    %c0_13 = arith.constant 0 : index
    %12 = vector.load %arg6[%c0_12, %c0_13] : memref<1x32xf32, #tpu.memory_space<vmem>>, vector<1x32xf32>
    %13 = vector.broadcast %12 : vector<1x32xf32> to vector<8x32xf32>
    %14 = arith.addf %11, %13 : vector<8x32xf32>
    %c0_14 = arith.constant 0 : index
    %c0_15 = arith.constant 0 : index
    %c0_16 = arith.constant 0 : index
    %15 = vector.load %arg10[%c0_14, %c0_15, %c0_16] : memref<1x8x32xf32, #tpu.memory_space<vmem>>, vector<1x8x32xf32>
    %16 = vector.shape_cast %15 : vector<1x8x32xf32> to vector<8x32xf32>
    %17 = vector.shape_cast %14 : vector<8x32xf32> to vector<1x8x32xf32>
    tpu.vector_store %arg10[%c0_14, %c0_15, %c0_16], %17 {strides = array<i32>} : memref<1x8x32xf32, #tpu.memory_space<vmem>>, vector<1x8x32xf32>,
    %c0_17 = arith.constant 0 : index
    %c0_18 = arith.constant 0 : index
    %18 = vector.load %arg7[%c0_17, %c0_18] : memref<32x32xf32, #tpu.memory_space<vmem>>, vector<32x32xf32>
    %cst_19 = arith.constant dense<0.000000e+00> : vector<8x32xf32>
    %19 = tpu.matmul %1, %18, %cst_19 {dimension_numbers = #tpu.dot_dimension_numbers<[1], [0], [0], [1], [0, 0, 1, 1], [], []>} : vector<8x32xf32>, vector<32x32xf32>, vector<8x32xf32> -> vector<8x32xf32>
    %c0_20 = arith.constant 0 : index
    %c0_21 = arith.constant 0 : index
    %20 = vector.load %arg8[%c0_20, %c0_21] : memref<1x32xf32, #tpu.memory_space<vmem>>, vector<1x32xf32>
    %21 = vector.broadcast %20 : vector<1x32xf32> to vector<8x32xf32>
    %22 = arith.addf %19, %21 : vector<8x32xf32>
    %c0_22 = arith.constant 0 : index
    %c0_23 = arith.constant 0 : index
    %c0_24 = arith.constant 0 : index
    %23 = vector.load %arg11[%c0_22, %c0_23, %c0_24] : memref<1x8x32xf32, #tpu.memory_space<vmem>>, vector<1x8x32xf32>
    %24 = vector.shape_cast %23 : vector<1x8x32xf32> to vector<8x32xf32>
    %25 = vector.shape_cast %22 : vector<8x32xf32> to vector<1x8x32xf32>
    tpu.vector_store %arg11[%c0_22, %c0_23, %c0_24], %25 {strides = array<i32>} : memref<1x8x32xf32, #tpu.memory_space<vmem>>, vector<1x8x32xf32>,
    return
  }
  func.func @transform_0(%arg0: i32, %arg1: i32) -> (i32, i32, i32) {
    %c0_i32 = arith.constant 0 : i32
    %c0_i32_0 = arith.constant 0 : i32
    return %arg0, %arg1, %c0_i32 : i32, i32, i32
  }
  func.func @transform_1(%arg0: i32, %arg1: i32) -> (i32, i32) {
    %c0_i32 = arith.constant 0 : i32
    %c0_i32_0 = arith.constant 0 : i32
    %c0_i32_1 = arith.constant 0 : i32
    return %c0_i32, %c0_i32_0 : i32, i32
  }
  func.func @transform_2(%arg0: i32, %arg1: i32) -> (i32, i32) {
    %c0_i32 = arith.constant 0 : i32
    %c0_i32_0 = arith.constant 0 : i32
    %c0_i32_1 = arith.constant 0 : i32
    return %c0_i32, %c0_i32_0 : i32, i32
  }
  func.func @transform_3(%arg0: i32, %arg1: i32) -> (i32, i32) {
    %c0_i32 = arith.constant 0 : i32
    %c0_i32_0 = arith.constant 0 : i32
    %c0_i32_1 = arith.constant 0 : i32
    return %c0_i32, %c0_i32_0 : i32, i32
  }
  func.func @transform_4(%arg0: i32, %arg1: i32) -> (i32, i32) {
    %c0_i32 = arith.constant 0 : i32
    %c0_i32_0 = arith.constant 0 : i32
    %c0_i32_1 = arith.constant 0 : i32
    return %c0_i32, %c0_i32_0 : i32, i32
  }
  func.func @transform_5(%arg0: i32, %arg1: i32) -> (i32, i32) {
    %c0_i32 = arith.constant 0 : i32
    %c0_i32_0 = arith.constant 0 : i32
    %c0_i32_1 = arith.constant 0 : i32
    return %c0_i32, %c0_i32_0 : i32, i32
  }
  func.func @transform_6(%arg0: i32, %arg1: i32) -> (i32, i32) {
    %c0_i32 = arith.constant 0 : i32
    %c0_i32_0 = arith.constant 0 : i32
    %c0_i32_1 = arith.constant 0 : i32
    return %c0_i32, %c0_i32_0 : i32, i32
  }
  func.func @transform_7(%arg0: i32, %arg1: i32) -> (i32, i32, i32) {
    %c0_i32 = arith.constant 0 : i32
    %c0_i32_0 = arith.constant 0 : i32
    return %arg0, %arg1, %c0_i32 : i32, i32, i32
  }
  func.func @transform_8(%arg0: i32, %arg1: i32) -> (i32, i32, i32) {
    %c0_i32 = arith.constant 0 : i32
    %c0_i32_0 = arith.constant 0 : i32
    return %arg0, %arg1, %c0_i32 : i32, i32, i32
  }
  func.func @transform_9(%arg0: i32, %arg1: i32) -> (i32, i32, i32) {
    %c0_i32 = arith.constant 0 : i32
    %c0_i32_0 = arith.constant 0 : i32
    return %arg0, %arg1, %c0_i32 : i32, i32, i32
  }
}

</mosaic_0001>

<llo_original>
// kernel: tpu_custom_call.1
$region0: #{tpu_custom_call.1}
  #allocation0 [shape = 'u32[]', space=smem, size = 0x4, offset = 0x4, fixed_abs, tag = 'smem constant byte address 0x4 - core index']
  #allocation1 [shape = 'u32[144,128]{1,0:T(1,128)}', space=vmem, size = 0x12000, scoped, tag = 'internal scratch']
  %s0 = inlined_call_operand.hbm [shape: f32[2,8,32], index: 0, kind: input, shape index: {}]
  %s1 = inlined_call_operand.hbm [shape: f32[32,32], index: 1, kind: input, shape index: {}]
  %s2 = inlined_call_operand.vmem [shape: f32[1,32], index: 2, kind: input, shape index: {}]
  %s3 = inlined_call_operand.hbm [shape: f32[32,32], index: 3, kind: input, shape index: {}]
  %s4 = inlined_call_operand.vmem [shape: f32[1,32], index: 4, kind: input, shape index: {}]
  %s5 = inlined_call_operand.hbm [shape: f32[32,32], index: 5, kind: input, shape index: {}]
  %s6 = inlined_call_operand.vmem [shape: f32[1,32], index: 6, kind: input, shape index: {}]
  %s7 = inlined_call_operand.hbm [shape: f32[2,8,32], index: 7, kind: output, shape index: {0}]
  %s8 = inlined_call_operand.hbm [shape: f32[2,8,32], index: 8, kind: output, shape index: {1}]
  %s9 = inlined_call_operand.hbm [shape: f32[2,8,32], index: 9, kind: output, shape index: {2}]
  %10 = xla_tuple %s7, %s8, %s9
  %s11 = sld [smem:[#allocation0]]
  $region93: #{tpu_custom_call.1} parent=0
    _
  %s13 = ssub.s32 1, %s11
  %s14 = scalar_select 0, %s13, %s11
  $region1: #{tpu_custom_call.1} parent=0
    #allocation2 [shape = 'u8[8192]{0}', space=vmem, size = 0x2000, scoped, tag = 'input window, operand 0']
    #allocation3 [shape = 's32[2]{0}', space=sflag, size = 0x8, scoped, tag = 'scoped memory for tpu_custom_call.1']
    #allocation4 [shape = 's32[2]{0}', space=sflag, size = 0x8, scoped, tag = 'scoped memory for tpu_custom_call.1']
    #allocation5 [shape = 'u8[16384]{0}', space=vmem, size = 0x4000, scoped, tag = 'input window, operand 1, single buffered']
    #allocation6 [shape = 's32[1]{0}', space=sflag, size = 0x4, scoped, tag = 'scoped memory for tpu_custom_call.1']
    #allocation7 [shape = 'u8[16384]{0}', space=vmem, size = 0x4000, scoped, tag = 'input window, operand 3, single buffered']
    #allocation8 [shape = 'u8[16384]{0}', space=vmem, size = 0x4000, scoped, tag = 'input window, operand 5, single buffered']
    #allocation9 [shape = 's32[1]{0}', space=sflag, size = 0x4, scoped, tag = 'scoped memory for tpu_custom_call.1']
    #allocation10 [shape = 'u8[8192]{0}', space=vmem, size = 0x2000, scoped, tag = 'output window, operand 0']
    #allocation11 [shape = 'u8[8192]{0}', space=vmem, size = 0x2000, scoped, tag = 'output window, operand 1']
    #allocation12 [shape = 's32[2]{0}', space=sflag, size = 0x8, scoped, tag = 'scoped memory for tpu_custom_call.1']
    #allocation13 [shape = 'u8[8192]{0}', space=vmem, size = 0x2000, scoped, tag = 'output window, operand 2']
    %15 = vsyncpa [#allocation3], 0
    %s16 = scalar_lea.sflag [#allocation3], 1
    %17 = vsyncpa %s16, 0
    %18 = vsyncpa [#allocation6], 0
    %19 = vsyncpa [#allocation9], 0
    %20 = vsyncpa [#allocation4], 0
    %s21 = scalar_lea.sflag [#allocation4], 1
    %22 = vsyncpa %s21, 0
    %23 = vsyncpa [#allocation12], 0
    %s24 = scalar_lea.sflag [#allocation12], 1
    %25 = vsyncpa %s24, 0
    loop: start=0, step=1, limit=4
    $region2: #{tpu_custom_call.1} parent=1 // loop_pre_header
      _
    $region3: #{tpu_custom_call.1} parent=1 // loop_header
      %s27 = sphi 0, %s31
      %p28 = scmp.ge.s32.totalorder %s27, 4
      %s34 = sphi 0, %s46
      %s35 = sphi 0, %s42
      %s36 = sphi 0, %s34
      %s37 = sphi 0, %s35
      %s38 = sphi 0, %s36
      %s39 = sphi 0, %s37
      %s51 = sphi 0, %s53
      %s54 = sphi 0, %s51
      %s55 = sphi 0, %s54
      %s71 = sphi 0, %s55
      %s75 = sphi 0, %s75
      %s77 = sphi 0, %s75
      %s78 = sphi 0, %s77
      %s92 = sphi 0, %s78
      %s96 = sphi 0, %s96
      %s98 = sphi 0, %s96
      %s99 = sphi 0, %s98
      %s113 = sphi 0, %s99
      %s117 = sphi 0, %s117
      %s119 = sphi 0, %s117
      %s120 = sphi 0, %s119
      %s134 = sphi 0, %s120
      %s138 = sphi 0, %s138
      %s140 = sphi 0, %s138
      %s141 = sphi 0, %s140
      %s155 = sphi 0, %s141
      %s159 = sphi 0, %s159
      %s161 = sphi 0, %s159
      %s162 = sphi 0, %s161
      %s176 = sphi 0, %s162
      %s180 = sphi 0, %s180
      %s182 = sphi 0, %s180
      %s183 = sphi 0, %s182
      %s197 = sphi 0, %s183
      %s205 = sphi 0, %s207
      %s208 = sphi 0, %s205
      %s209 = sphi 0, %s208
      %s225 = sphi 0, %s209
      %s233 = sphi 0, %s235
      %s236 = sphi 0, %s233
      %s237 = sphi 0, %s236
      %s253 = sphi 0, %s237
      %s261 = sphi 0, %s263
      %s264 = sphi 0, %s261
      %s265 = sphi 0, %s264
      %s281 = sphi 0, %s265
    $region4: #{tpu_custom_call.1} parent=1 // loop_header_branch
      %30 = sbr.rel (%p28) target = $region8
    $region5: #{tpu_custom_call.1} parent=1 // loop_body
      %s32 = ssub.s32 %s27, 1
      %s33 = ssub.s32 %s27, 2
      %s40 = sadd.s32 1, %s35
      %p41 = scmp.ge.s32.totalorder %s40, 1
      %s42 = scalar_select %p41, 0, %s40
      %s43 = sadd.s32 1, %s34
      %s44 = scalar_select %p41, %s43, %s34
      %p45 = scmp.ge.s32.totalorder %s44, 2
      %s46 = scalar_select %p45, 0, %s44
      %s47 = ssub.s32 %s34, %s46
      %s48 = ssub.s32 %s35, %s42
      %s49 = sor.u32 %s47, %s48
      %p50 = scmp.eq.s32.totalorder %s49, 0
      %s52 = sadd.s32 %s51, 1
      %s53 = scalar_select %p50, %s51, %s52
      %p56 = pneg %p50
      %p57 = scmp.eq.s32.totalorder %s27, 1
      %p58 = por %p56, %p57
      %p59 = scmp.ne.s32.totalorder %s51, %s54
      %p60 = scmp.eq.s32.totalorder %s27, 0
      %p61 = por %p59, %p60
      %p62 = scmp.ne.s32.totalorder %s51, %s54
      %p63 = scmp.eq.s32.totalorder %s32, 1
      %p64 = por %p62, %p63
      %p65 = scmp.ne.s32.totalorder %s54, %s55
      %p66 = scmp.eq.s32.totalorder %s32, 0
      %p67 = por %p65, %p66
      %p68 = scmp.ne.s32.totalorder %s54, %s55
      %p69 = scmp.eq.s32.totalorder %s33, 1
      %p70 = por %p68, %p69
      %p72 = scmp.ne.s32.totalorder %s55, %s71
      %p73 = scmp.eq.s32.totalorder %s33, 0
      %p74 = por %p72, %p73
      %s76 = sadd.s32 %s75, 1
      %p79 = scmp.eq.s32.totalorder %s27, 1
      %p80 = scmp.ne.s32.totalorder %s75, %s77
      %p81 = scmp.eq.s32.totalorder %s27, 0
      %p82 = por %p80, %p81
      %p83 = scmp.ne.s32.totalorder %s75, %s77
      %p84 = scmp.eq.s32.totalorder %s32, 1
      %p85 = por %p83, %p84
      %p86 = scmp.ne.s32.totalorder %s77, %s78
      %p87 = scmp.eq.s32.totalorder %s32, 0
      %p88 = por %p86, %p87
      %p89 = scmp.ne.s32.totalorder %s77, %s78
      %p90 = scmp.eq.s32.totalorder %s33, 1
      %p91 = por %p89, %p90
      %p93 = scmp.ne.s32.totalorder %s78, %s92
      %p94 = scmp.eq.s32.totalorder %s33, 0
      %p95 = por %p93, %p94
      %s97 = sadd.s32 %s96, 1
      %p100 = scmp.eq.s32.totalorder %s27, 1
      %p101 = scmp.ne.s32.totalorder %s96, %s98
      %p102 = scmp.eq.s32.totalorder %s27, 0
      %p103 = por %p101, %p102
      %p104 = scmp.ne.s32.totalorder %s96, %s98
      %p105 = scmp.eq.s32.totalorder %s32, 1
      %p106 = por %p104, %p105
      %p107 = scmp.ne.s32.totalorder %s98, %s99
      %p108 = scmp.eq.s32.totalorder %s32, 0
      %p109 = por %p107, %p108
      %p110 = scmp.ne.s32.totalorder %s98, %s99
      %p111 = scmp.eq.s32.totalorder %s33, 1
      %p112 = por %p110, %p111
      %p114 = scmp.ne.s32.totalorder %s99, %s113
      %p115 = scmp.eq.s32.totalorder %s33, 0
      %p116 = por %p114, %p115
      %s118 = sadd.s32 %s117, 1
      %p121 = scmp.eq.s32.totalorder %s27, 1
      %p122 = scmp.ne.s32.totalorder %s117, %s119
      %p123 = scmp.eq.s32.totalorder %s27, 0
      %p124 = por %p122, %p123
      %p125 = scmp.ne.s32.totalorder %s117, %s119
      %p126 = scmp.eq.s32.totalorder %s32, 1
      %p127 = por %p125, %p126
      %p128 = scmp.ne.s32.totalorder %s119, %s120
      %p129 = scmp.eq.s32.totalorder %s32, 0
      %p130 = por %p128, %p129
      %p131 = scmp.ne.s32.totalorder %s119, %s120
      %p132 = scmp.eq.s32.totalorder %s33, 1
      %p133 = por %p131, %p132
      %p135 = scmp.ne.s32.totalorder %s120, %s134
      %p136 = scmp.eq.s32.totalorder %s33, 0
      %p137 = por %p135, %p136
      %s139 = sadd.s32 %s138, 1
      %p142 = scmp.eq.s32.totalorder %s27, 1
      %p143 = scmp.ne.s32.totalorder %s138, %s140
      %p144 = scmp.eq.s32.totalorder %s27, 0
      %p145 = por %p143, %p144
      %p146 = scmp.ne.s32.totalorder %s138, %s140
      %p147 = scmp.eq.s32.totalorder %s32, 1
      %p148 = por %p146, %p147
      %p149 = scmp.ne.s32.totalorder %s140, %s141
      %p150 = scmp.eq.s32.totalorder %s32, 0
      %p151 = por %p149, %p150
      %p152 = scmp.ne.s32.totalorder %s140, %s141
      %p153 = scmp.eq.s32.totalorder %s33, 1
      %p154 = por %p152, %p153
      %p156 = scmp.ne.s32.totalorder %s141, %s155
      %p157 = scmp.eq.s32.totalorder %s33, 0
      %p158 = por %p156, %p157
      %s160 = sadd.s32 %s159, 1
      %p163 = scmp.eq.s32.totalorder %s27, 1
      %p164 = scmp.ne.s32.totalorder %s159, %s161
      %p165 = scmp.eq.s32.totalorder %s27, 0
      %p166 = por %p164, %p165
      %p167 = scmp.ne.s32.totalorder %s159, %s161
      %p168 = scmp.eq.s32.totalorder %s32, 1
      %p169 = por %p167, %p168
      %p170 = scmp.ne.s32.totalorder %s161, %s162
      %p171 = scmp.eq.s32.totalorder %s32, 0
      %p172 = por %p170, %p171
      %p173 = scmp.ne.s32.totalorder %s161, %s162
      %p174 = scmp.eq.s32.totalorder %s33, 1
      %p175 = por %p173, %p174
      %p177 = scmp.ne.s32.totalorder %s162, %s176
      %p178 = scmp.eq.s32.totalorder %s33, 0
      %p179 = por %p177, %p178
      %s181 = sadd.s32 %s180, 1
      %p184 = scmp.eq.s32.totalorder %s27, 1
      %p185 = scmp.ne.s32.totalorder %s180, %s182
      %p186 = scmp.eq.s32.totalorder %s27, 0
      %p187 = por %p185, %p186
      %p188 = scmp.ne.s32.totalorder %s180, %s182
      %p189 = scmp.eq.s32.totalorder %s32, 1
      %p190 = por %p188, %p189
      %p191 = scmp.ne.s32.totalorder %s182, %s183
      %p192 = scmp.eq.s32.totalorder %s32, 0
      %p193 = por %p191, %p192
      %p194 = scmp.ne.s32.totalorder %s182, %s183
      %p195 = scmp.eq.s32.totalorder %s33, 1
      %p196 = por %p194, %p195
      %p198 = scmp.ne.s32.totalorder %s183, %s197
      %p199 = scmp.eq.s32.totalorder %s33, 0
      %p200 = por %p198, %p199
      %s201 = ssub.s32 %s34, %s46
      %s202 = ssub.s32 %s35, %s42
      %s203 = sor.u32 %s201, %s202
      %p204 = scmp.eq.s32.totalorder %s203, 0
      %s206 = sadd.s32 %s205, 1
      %s207 = scalar_select %p204, %s205, %s206
      %p210 = pneg %p204
      %p211 = scmp.eq.s32.totalorder %s27, 1
      %p212 = por %p210, %p211
      %p213 = scmp.ne.s32.totalorder %s205, %s208
      %p214 = scmp.eq.s32.totalorder %s27, 0
      %p215 = por %p213, %p214
      %p216 = scmp.ne.s32.totalorder %s205, %s208
      %p217 = scmp.eq.s32.totalorder %s32, 1
      %p218 = por %p216, %p217
      %p219 = scmp.ne.s32.totalorder %s208, %s209
      %p220 = scmp.eq.s32.totalorder %s32, 0
      %p221 = por %p219, %p220
      %p222 = scmp.ne.s32.totalorder %s208, %s209
      %p223 = scmp.eq.s32.totalorder %s33, 1
      %p224 = por %p222, %p223
      %p226 = scmp.ne.s32.totalorder %s209, %s225
      %p227 = scmp.eq.s32.totalorder %s33, 0
      %p228 = por %p226, %p227
      %s229 = ssub.s32 %s34, %s46
      %s230 = ssub.s32 %s35, %s42
      %s231 = sor.u32 %s229, %s230
      %p232 = scmp.eq.s32.totalorder %s231, 0
      %s234 = sadd.s32 %s233, 1
      %s235 = scalar_select %p232, %s233, %s234
      %p238 = pneg %p232
      %p239 = scmp.eq.s32.totalorder %s27, 1
      %p240 = por %p238, %p239
      %p241 = scmp.ne.s32.totalorder %s233, %s236
      %p242 = scmp.eq.s32.totalorder %s27, 0
      %p243 = por %p241, %p242
      %p244 = scmp.ne.s32.totalorder %s233, %s236
      %p245 = scmp.eq.s32.totalorder %s32, 1
      %p246 = por %p244, %p245
      %p247 = scmp.ne.s32.totalorder %s236, %s237
      %p248 = scmp.eq.s32.totalorder %s32, 0
      %p249 = por %p247, %p248
      %p250 = scmp.ne.s32.totalorder %s236, %s237
      %p251 = scmp.eq.s32.totalorder %s33, 1
      %p252 = por %p250, %p251
      %p254 = scmp.ne.s32.totalorder %s237, %s253
      %p255 = scmp.eq.s32.totalorder %s33, 0
      %p256 = por %p254, %p255
      %s257 = ssub.s32 %s34, %s46
      %s258 = ssub.s32 %s35, %s42
      %s259 = sor.u32 %s257, %s258
      %p260 = scmp.eq.s32.totalorder %s259, 0
      %s262 = sadd.s32 %s261, 1
      %s263 = scalar_select %p260, %s261, %s262
      %p266 = pneg %p260
      %p267 = scmp.eq.s32.totalorder %s27, 1
      %p268 = por %p266, %p267
      %p269 = scmp.ne.s32.totalorder %s261, %s264
      %p270 = scmp.eq.s32.totalorder %s27, 0
      %p271 = por %p269, %p270
      %p272 = scmp.ne.s32.totalorder %s261, %s264
      %p273 = scmp.eq.s32.totalorder %s32, 1
      %p274 = por %p272, %p273
      %p275 = scmp.ne.s32.totalorder %s264, %s265
      %p276 = scmp.eq.s32.totalorder %s32, 0
      %p277 = por %p275, %p276
      %p278 = scmp.ne.s32.totalorder %s264, %s265
      %p279 = scmp.eq.s32.totalorder %s33, 1
      %p280 = por %p278, %p279
      %p282 = scmp.ne.s32.totalorder %s265, %s281
      %p283 = scmp.eq.s32.totalorder %s33, 0
      %p284 = por %p282, %p283
      %p285 = scmp.le.s32.totalorder 1, %s27
      %p286 = scmp.lt.s32.totalorder %s27, 3
      %p287 = pnand %p285, %p286
      %p288 = pneg %p287
      // Predicated region
      $region9: #{tpu_custom_call.1} parent=5 // pred_check
        _
      $region10: #{tpu_custom_call.1} parent=5 // pred_check_branch
        %290 = sbr.rel (%p287) target = $region12
      $region11: #{tpu_custom_call.1} parent=5 // pred_region
        %s291 = ssub.s32 %s27, 1
        // Predicated region
        $region13: #{tpu_custom_call.1} parent=11 // pred_check
          %p292 = pneg %p88
        $region14: #{tpu_custom_call.1} parent=11 // pred_check_branch
          %294 = sbr.rel (%p292) target = $region16
        $region15: #{tpu_custom_call.1} parent=11 // pred_region
          %s296 = ssub.s32 512, 512
          %297 = vsyncadd [#allocation6], %s296
          %s298 = sshll.u32 [#allocation5], 4
          %s299 = int_to_ptr.vmem [resolvable:$true] %s298
          %304 = dma.hbm_to_vmem [thread:$0]  %s1, 512, %s299, [#allocation6], 128, 128, 8
        $region16: #{tpu_custom_call.1} parent=11 // pred_fallthru
          _
        // Predicated region
        $region17: #{tpu_custom_call.1} parent=11 // pred_check
          %p305 = pneg %p109
        $region18: #{tpu_custom_call.1} parent=11 // pred_check_branch
          %307 = sbr.rel (%p305) target = $region20
        $region19: #{tpu_custom_call.1} parent=11 // pred_region
          _
        $region20: #{tpu_custom_call.1} parent=11 // pred_fallthru
          _
        // Predicated region
        $region21: #{tpu_custom_call.1} parent=11 // pred_check
          %p308 = pneg %p130
        $region22: #{tpu_custom_call.1} parent=11 // pred_check_branch
          %310 = sbr.rel (%p308) target = $region24
        $region23: #{tpu_custom_call.1} parent=11 // pred_region
          %s312 = ssub.s32 512, 512
          %313 = vsyncadd [#allocation6], %s312
          %s314 = sshll.u32 [#allocation7], 4
          %s315 = int_to_ptr.vmem [resolvable:$true] %s314
          %320 = dma.hbm_to_vmem [thread:$0]  %s3, 512, %s315, [#allocation6], 128, 128, 8
        $region24: #{tpu_custom_call.1} parent=11 // pred_fallthru
          _
        // Predicated region
        $region25: #{tpu_custom_call.1} parent=11 // pred_check
          %p321 = pneg %p151
        $region26: #{tpu_custom_call.1} parent=11 // pred_check_branch
          %323 = sbr.rel (%p321) target = $region28
        $region27: #{tpu_custom_call.1} parent=11 // pred_region
          _
        $region28: #{tpu_custom_call.1} parent=11 // pred_fallthru
          _
        // Predicated region
        $region29: #{tpu_custom_call.1} parent=11 // pred_check
          %p324 = pneg %p172
        $region30: #{tpu_custom_call.1} parent=11 // pred_check_branch
          %326 = sbr.rel (%p324) target = $region32
        $region31: #{tpu_custom_call.1} parent=11 // pred_region
          %s328 = ssub.s32 512, 512
          %329 = vsyncadd [#allocation9], %s328
          %s330 = sshll.u32 [#allocation8], 4
          %s331 = int_to_ptr.vmem [resolvable:$true] %s330
          %336 = dma.hbm_to_vmem [thread:$0]  %s5, 512, %s331, [#allocation9], 128, 128, 8
        $region32: #{tpu_custom_call.1} parent=11 // pred_fallthru
          _
        // Predicated region
        $region33: #{tpu_custom_call.1} parent=11 // pred_check
          %p337 = pneg %p193
        $region34: #{tpu_custom_call.1} parent=11 // pred_check_branch
          %339 = sbr.rel (%p337) target = $region36
        $region35: #{tpu_custom_call.1} parent=11 // pred_region
          _
        $region36: #{tpu_custom_call.1} parent=11 // pred_fallthru
          _
      $region12: #{tpu_custom_call.1} parent=5 // pred_fallthru
        _
      %p340 = scmp.lt.s32.totalorder %s27, 2
      // Predicated region
      $region37: #{tpu_custom_call.1} parent=5 // pred_check
        %p341 = pneg %p340
      $region38: #{tpu_custom_call.1} parent=5 // pred_check_branch
        %343 = sbr.rel (%p341) target = $region40
      $region39: #{tpu_custom_call.1} parent=5 // pred_region
        // Predicated region
        $region41: #{tpu_custom_call.1} parent=39 // pred_check
          %p344 = pneg %p61
        $region42: #{tpu_custom_call.1} parent=39 // pred_check_branch
          %346 = sbr.rel (%p344) target = $region44
        $region43: #{tpu_custom_call.1} parent=39 // pred_region
          %s347 = sand.u32 %s51, 1
          %s348 = scalar_lea.sflag [#allocation3], %s347
          %s349 = sand.u32 %s51, 1
          %s350 = smul.addr %s349, 8
          %s351 = scalar_lea.vmem [#allocation2], %s350
          %s353 = ssub.s32 128, 128
          %354 = vsyncadd %s348, %s353
          %s355 = sadd.s32 %s35, %s34
          %s356 = smul.addr %s355, 128
          %s357 = scalar_lea.hbm %s0, %s356
          %s359 = sshll.u32 %s351, 4
          %s360 = int_to_ptr.vmem [resolvable:$true] %s359
          %362 = dma.hbm_to_vmem [thread:$0]  %s357, 128, %s360, %s348
        $region44: #{tpu_custom_call.1} parent=39 // pred_fallthru
          _
      $region40: #{tpu_custom_call.1} parent=5 // pred_fallthru
        _
      %p363 = scmp.le.s32.totalorder 1, %s27
      %p364 = scmp.lt.s32.totalorder %s27, 3
      %p365 = pnand %p363, %p364
      %p366 = pneg %p365
      // Predicated region
      $region45: #{tpu_custom_call.1} parent=5 // pred_check
        _
      $region46: #{tpu_custom_call.1} parent=5 // pred_check_branch
        %368 = sbr.rel (%p365) target = $region48
      $region47: #{tpu_custom_call.1} parent=5 // pred_region
        %s369 = ssub.s32 %s27, 1
        %s370 = sand.u32 %s54, 1
        %s371 = scalar_lea.sflag [#allocation3], %s370
        %s372 = sand.u32 %s54, 1
        %s373 = smul.addr %s372, 8
        %s374 = scalar_lea.vmem [#allocation2], %s373
        // Predicated region
        $region49: #{tpu_custom_call.1} parent=47 // pred_check
          %p375 = pneg %p67
        $region50: #{tpu_custom_call.1} parent=47 // pred_check_branch
          %377 = sbr.rel (%p375) target = $region52
        $region51: #{tpu_custom_call.1} parent=47 // pred_region
          %378 = dma.done %s371, 128
        $region52: #{tpu_custom_call.1} parent=47 // pred_fallthru
          _
        // Predicated region
        $region53: #{tpu_custom_call.1} parent=47 // pred_check
          %p379 = pneg %p88
        $region54: #{tpu_custom_call.1} parent=47 // pred_check_branch
          %381 = sbr.rel (%p379) target = $region56
        $region55: #{tpu_custom_call.1} parent=47 // pred_region
          %382 = dma.done [#allocation6], 512
        $region56: #{tpu_custom_call.1} parent=47 // pred_fallthru
          _
        // Predicated region
        $region57: #{tpu_custom_call.1} parent=47 // pred_check
          %p383 = pneg %p130
        $region58: #{tpu_custom_call.1} parent=47 // pred_check_branch
          %385 = sbr.rel (%p383) target = $region60
        $region59: #{tpu_custom_call.1} parent=47 // pred_region
          %386 = dma.done [#allocation6], 512
        $region60: #{tpu_custom_call.1} parent=47 // pred_fallthru
          _
        // Predicated region
        $region61: #{tpu_custom_call.1} parent=47 // pred_check
          %p387 = pneg %p172
        $region62: #{tpu_custom_call.1} parent=47 // pred_check_branch
          %389 = sbr.rel (%p387) target = $region64
        $region63: #{tpu_custom_call.1} parent=47 // pred_region
          %390 = dma.done [#allocation9], 512
        $region64: #{tpu_custom_call.1} parent=47 // pred_fallthru
          _
        %s391 = sand.u32 %s54, 1
        %s392 = scalar_lea.sflag [#allocation3], %s391
        %s393 = sand.u32 %s54, 1
        %s394 = smul.addr %s393, 8
        %s395 = scalar_lea.vmem [#allocation2], %s394
        %p396 = pneg %p67
        %p397 = pneg %p64
        %p398 = pneg %p88
        %p399 = pneg %p85
        %p400 = pneg %p109
        %p401 = pneg %p106
        %p402 = pneg %p130
        %p403 = pneg %p127
        %p404 = pneg %p151
        %p405 = pneg %p148
        %p406 = pneg %p172
        %p407 = pneg %p169
        %p408 = pneg %p193
        %p409 = pneg %p190
        %p410 = pneg %p221
        %p411 = pneg %p218
        %s412 = sand.u32 %s208, 1
        %s413 = scalar_lea.sflag [#allocation4], %s412
        %s414 = sand.u32 %s208, 1
        %s415 = smul.addr %s414, 8
        %s416 = scalar_lea.vmem [#allocation10], %s415
        %p417 = pneg %p249
        %p418 = pneg %p246
        %s419 = sand.u32 %s32, 1
        %s420 = scalar_lea.sflag [#allocation12], %s419
        %s421 = sand.u32 %s236, 1
        %s422 = smul.addr %s421, 8
        %s423 = scalar_lea.vmem [#allocation11], %s422
        %p424 = pneg %p277
        %p425 = pneg %p274
        %s426 = sand.u32 %s32, 1
        %s427 = scalar_lea.sflag [#allocation12], %s426
        %s428 = sand.u32 %s264, 1
        %s429 = smul.addr %s428, 8
        %s430 = scalar_lea.vmem [#allocation13], %s429
        %v431 = vld [vmem:[%s374] sm:$0xff]
        %v432 = vld [vmem:[#allocation5] sm:$0xff]
        %v433 = vld [vmem:[#allocation5 + $0x8] sm:$0xff]
        %v434 = vld [vmem:[#allocation5 + $0x10] sm:$0xff]
        %v435 = vld [vmem:[#allocation5 + $0x18] sm:$0xff]
        %v436 = vld [vmem:[%s2] sm:$0x1]
        %v438 = vlaneseq
        %v439 = vshrl.u32 %v438, 7
        %v440 = vsub.s32 0, %v439
        %v441 = vrot.slane %v436, %v440
        %vm443 = vcmask 261120
        %v445 = vsel %vm443, %v431, 0
        %447 = vmatprep.subr.mxu0 0.0
        %448 = vmatpush1.msra.mxu0 0.0
        %449 = vmatprep.subr.mxu0 0.0
        %450 = vmatpush1.msra.mxu0 0.0
        %451 = vmatprep.subr.mxu0 0.0
        %452 = vmatpush1.msra.mxu0 0.0
        %453 = vmatprep.subr.mxu0 0.0
        %454 = vmatpush1.msra.mxu0 0.0
        %455 = vmatprep.subr.mxu0 0.0
        %456 = vmatpush1.msra.mxu0 0.0
        %457 = vmatprep.subr.mxu0 0.0
        %458 = vmatpush1.msra.mxu0 0.0
        %459 = vmatprep.subr.mxu0 0.0
        %460 = vmatpush1.msra.mxu0 0.0
        %461 = vmatprep.subr.mxu0 0.0
        %462 = vmatpush1.msra.mxu0 0.0
        %463 = vmatprep.subr.mxu0 0.0
        %464 = vmatpush1.msra.mxu0 0.0
        %465 = vmatprep.subr.mxu0 0.0
        %466 = vmatpush1.msra.mxu0 0.0
        %467 = vmatprep.subr.mxu0 0.0
        %468 = vmatpush1.msra.mxu0 0.0
        %469 = vmatprep.subr.mxu0 0.0
        %470 = vmatpush1.msra.mxu0 0.0
        %471 = vmatprep.subr.mxu0 0.0
        %472 = vmatpush1.msra.mxu0 %v435
        %473 = vmatprep.subr.mxu0 0.0
        %474 = vmatpush1.msra.mxu0 %v434
        %475 = vmatprep.subr.mxu0 0.0
        %476 = vmatpush1.msra.mxu0 %v433
        %477 = vmatprep.subr.mxu0 0.0
        %478 = vmatpush1.msra.mxu0 %v432
        %479 = vmatprep.subr.mxu0 0.0
        %480 = vmatpush2.msra.mxu0 0.0
        %481 = vmatprep.subr.mxu0 0.0
        %482 = vmatpush2.msra.mxu0 0.0
        %483 = vmatprep.subr.mxu0 0.0
        %484 = vmatpush2.msra.mxu0 0.0
        %485 = vmatprep.subr.mxu0 0.0
        %486 = vmatpush2.msra.mxu0 0.0
        %487 = vmatprep.subr.mxu0 0.0
        %488 = vmatpush2.msra.mxu0 0.0
        %489 = vmatprep.subr.mxu0 0.0
        %490 = vmatpush2.msra.mxu0 0.0
        %491 = vmatprep.subr.mxu0 0.0
        %492 = vmatpush2.msra.mxu0 0.0
        %493 = vmatprep.subr.mxu0 0.0
        %494 = vmatpush2.msra.mxu0 0.0
        %495 = vmatprep.subr.mxu0 0.0
        %496 = vmatpush2.msra.mxu0 0.0
        %497 = vmatprep.subr.mxu0 0.0
        %498 = vmatpush2.msra.mxu0 0.0
        %499 = vmatprep.subr.mxu0 0.0
        %500 = vmatpush2.msra.mxu0 0.0
        %501 = vmatprep.subr.mxu0 0.0
        %502 = vmatpush2.msra.mxu0 0.0
        %503 = vmatprep.subr.mxu0 0.0
        %504 = vmatpush2.msra.mxu0 0.0
        %505 = vmatprep.subr.mxu0 0.0
        %506 = vmatpush2.msra.mxu0 0.0
        %507 = vmatprep.subr.mxu0 0.0
        %508 = vmatpush2.msra.mxu0 0.0
        %509 = vmatprep.subr.mxu0 0.0
        %510 = vmatpush2.msra.mxu0 0.0
        %511 = vmatprep.mubr.f32.mxu0 0.0
        %512 = vmatmul.mubr.f32.gmra.mxu0 %v445
        %v513 = vpop.f32.mrf.mxu0
        %v514 = vadd.f32 %v441, %v513
        %v515 = vpop.f32.mrf.mxu0
        %516 = vdwg.mxu0
        %517 = vst.msk [vmem:[%s416] sm:$0xff] %vm443, %v514
        %v518 = vld [vmem:[#allocation7] sm:$0xff]
        %v519 = vld [vmem:[#allocation7 + $0x8] sm:$0xff]
        %v520 = vld [vmem:[#allocation7 + $0x10] sm:$0xff]
        %v521 = vld [vmem:[#allocation7 + $0x18] sm:$0xff]
        %v522 = vld [vmem:[%s4] sm:$0x1]
        %v524 = vlaneseq
        %v525 = vshrl.u32 %v524, 7
        %v526 = vsub.s32 0, %v525
        %v527 = vrot.slane %v522, %v526
        %529 = vmatprep.subr.mxu0 0.0
        %530 = vmatpush1.msra.mxu0 0.0
        %531 = vmatprep.subr.mxu0 0.0
        %532 = vmatpush1.msra.mxu0 0.0
        %533 = vmatprep.subr.mxu0 0.0
        %534 = vmatpush1.msra.mxu0 0.0
        %535 = vmatprep.subr.mxu0 0.0
        %536 = vmatpush1.msra.mxu0 0.0
        %537 = vmatprep.subr.mxu0 0.0
        %538 = vmatpush1.msra.mxu0 0.0
        %539 = vmatprep.subr.mxu0 0.0
        %540 = vmatpush1.msra.mxu0 0.0
        %541 = vmatprep.subr.mxu0 0.0
        %542 = vmatpush1.msra.mxu0 0.0
        %543 = vmatprep.subr.mxu0 0.0
        %544 = vmatpush1.msra.mxu0 0.0
        %545 = vmatprep.subr.mxu0 0.0
        %546 = vmatpush1.msra.mxu0 0.0
        %547 = vmatprep.subr.mxu0 0.0
        %548 = vmatpush1.msra.mxu0 0.0
        %549 = vmatprep.subr.mxu0 0.0
        %550 = vmatpush1.msra.mxu0 0.0
        %551 = vmatprep.subr.mxu0 0.0
        %552 = vmatpush1.msra.mxu0 0.0
        %553 = vmatprep.subr.mxu0 0.0
        %554 = vmatpush1.msra.mxu0 %v521
        %555 = vmatprep.subr.mxu0 0.0
        %556 = vmatpush1.msra.mxu0 %v520
        %557 = vmatprep.subr.mxu0 0.0
        %558 = vmatpush1.msra.mxu0 %v519
        %559 = vmatprep.subr.mxu0 0.0
        %560 = vmatpush1.msra.mxu0 %v518
        %561 = vmatprep.subr.mxu0 0.0
        %562 = vmatpush2.msra.mxu0 0.0
        %563 = vmatprep.subr.mxu0 0.0
        %564 = vmatpush2.msra.mxu0 0.0
        %565 = vmatprep.subr.mxu0 0.0
        %566 = vmatpush2.msra.mxu0 0.0
        %567 = vmatprep.subr.mxu0 0.0
        %568 = vmatpush2.msra.mxu0 0.0
        %569 = vmatprep.subr.mxu0 0.0
        %570 = vmatpush2.msra.mxu0 0.0
        %571 = vmatprep.subr.mxu0 0.0
        %572 = vmatpush2.msra.mxu0 0.0
        %573 = vmatprep.subr.mxu0 0.0
        %574 = vmatpush2.msra.mxu0 0.0
        %575 = vmatprep.subr.mxu0 0.0
        %576 = vmatpush2.msra.mxu0 0.0
        %577 = vmatprep.subr.mxu0 0.0
        %578 = vmatpush2.msra.mxu0 0.0
        %579 = vmatprep.subr.mxu0 0.0
        %580 = vmatpush2.msra.mxu0 0.0
        %581 = vmatprep.subr.mxu0 0.0
        %582 = vmatpush2.msra.mxu0 0.0
        %583 = vmatprep.subr.mxu0 0.0
        %584 = vmatpush2.msra.mxu0 0.0
        %585 = vmatprep.subr.mxu0 0.0
        %586 = vmatpush2.msra.mxu0 0.0
        %587 = vmatprep.subr.mxu0 0.0
        %588 = vmatpush2.msra.mxu0 0.0
        %589 = vmatprep.subr.mxu0 0.0
        %590 = vmatpush2.msra.mxu0 0.0
        %591 = vmatprep.subr.mxu0 0.0
        %592 = vmatpush2.msra.mxu0 0.0
        %593 = vmatprep.mubr.f32.mxu0 0.0
        %594 = vmatmul.mubr.f32.gmra.mxu0 %v445
        %v595 = vpop.f32.mrf.mxu0
        %v596 = vadd.f32 %v527, %v595
        %v597 = vpop.f32.mrf.mxu0
        %598 = vdwg.mxu0
        %599 = vst.msk [vmem:[%s423] sm:$0xff] %vm443, %v596
        %v600 = vld [vmem:[#allocation8] sm:$0xff]
        %v601 = vld [vmem:[#allocation8 + $0x8] sm:$0xff]
        %v602 = vld [vmem:[#allocation8 + $0x10] sm:$0xff]
        %v603 = vld [vmem:[#allocation8 + $0x18] sm:$0xff]
        %v604 = vld [vmem:[%s6] sm:$0x1]
        %v606 = vlaneseq
        %v607 = vshrl.u32 %v606, 7
        %v608 = vsub.s32 0, %v607
        %v609 = vrot.slane %v604, %v608
        %611 = vmatprep.subr.mxu0 0.0
        %612 = vmatpush1.msra.mxu0 0.0
        %613 = vmatprep.subr.mxu0 0.0
        %614 = vmatpush1.msra.mxu0 0.0
        %615 = vmatprep.subr.mxu0 0.0
        %616 = vmatpush1.msra.mxu0 0.0
        %617 = vmatprep.subr.mxu0 0.0
        %618 = vmatpush1.msra.mxu0 0.0
        %619 = vmatprep.subr.mxu0 0.0
        %620 = vmatpush1.msra.mxu0 0.0
        %621 = vmatprep.subr.mxu0 0.0
        %622 = vmatpush1.msra.mxu0 0.0
        %623 = vmatprep.subr.mxu0 0.0
        %624 = vmatpush1.msra.mxu0 0.0
        %625 = vmatprep.subr.mxu0 0.0
        %626 = vmatpush1.msra.mxu0 0.0
        %627 = vmatprep.subr.mxu0 0.0
        %628 = vmatpush1.msra.mxu0 0.0
        %629 = vmatprep.subr.mxu0 0.0
        %630 = vmatpush1.msra.mxu0 0.0
        %631 = vmatprep.subr.mxu0 0.0
        %632 = vmatpush1.msra.mxu0 0.0
        %633 = vmatprep.subr.mxu0 0.0
        %634 = vmatpush1.msra.mxu0 0.0
        %635 = vmatprep.subr.mxu0 0.0
        %636 = vmatpush1.msra.mxu0 %v603
        %637 = vmatprep.subr.mxu0 0.0
        %638 = vmatpush1.msra.mxu0 %v602
        %639 = vmatprep.subr.mxu0 0.0
        %640 = vmatpush1.msra.mxu0 %v601
        %641 = vmatprep.subr.mxu0 0.0
        %642 = vmatpush1.msra.mxu0 %v600
        %643 = vmatprep.subr.mxu0 0.0
        %644 = vmatpush2.msra.mxu0 0.0
        %645 = vmatprep.subr.mxu0 0.0
        %646 = vmatpush2.msra.mxu0 0.0
        %647 = vmatprep.subr.mxu0 0.0
        %648 = vmatpush2.msra.mxu0 0.0
        %649 = vmatprep.subr.mxu0 0.0
        %650 = vmatpush2.msra.mxu0 0.0
        %651 = vmatprep.subr.mxu0 0.0
        %652 = vmatpush2.msra.mxu0 0.0
        %653 = vmatprep.subr.mxu0 0.0
        %654 = vmatpush2.msra.mxu0 0.0
        %655 = vmatprep.subr.mxu0 0.0
        %656 = vmatpush2.msra.mxu0 0.0
        %657 = vmatprep.subr.mxu0 0.0
        %658 = vmatpush2.msra.mxu0 0.0
        %659 = vmatprep.subr.mxu0 0.0
        %660 = vmatpush2.msra.mxu0 0.0
        %661 = vmatprep.subr.mxu0 0.0
        %662 = vmatpush2.msra.mxu0 0.0
        %663 = vmatprep.subr.mxu0 0.0
        %664 = vmatpush2.msra.mxu0 0.0
        %665 = vmatprep.subr.mxu0 0.0
        %666 = vmatpush2.msra.mxu0 0.0
        %667 = vmatprep.subr.mxu0 0.0
        %668 = vmatpush2.msra.mxu0 0.0
        %669 = vmatprep.subr.mxu0 0.0
        %670 = vmatpush2.msra.mxu0 0.0
        %671 = vmatprep.subr.mxu0 0.0
        %672 = vmatpush2.msra.mxu0 0.0
        %673 = vmatprep.subr.mxu0 0.0
        %674 = vmatpush2.msra.mxu0 0.0
        %675 = vmatprep.mubr.f32.mxu0 0.0
        %676 = vmatmul.mubr.f32.gmra.mxu0 %v445
        %v677 = vpop.f32.mrf.mxu0
        %v678 = vadd.f32 %v609, %v677
        %v679 = vpop.f32.mrf.mxu0
        %680 = vdwg.mxu0
        %681 = vst.msk [vmem:[%s430] sm:$0xff] %vm443, %v678
        %s682 = sand.u32 %s208, 1
        %s683 = scalar_lea.sflag [#allocation4], %s682
        %s684 = sand.u32 %s208, 1
        %s685 = smul.addr %s684, 8
        %s686 = scalar_lea.vmem [#allocation10], %s685
        %s687 = sand.u32 %s32, 1
        %s688 = scalar_lea.sflag [#allocation12], %s687
        %s689 = sand.u32 %s236, 1
        %s690 = smul.addr %s689, 8
        %s691 = scalar_lea.vmem [#allocation11], %s690
        %s692 = sand.u32 %s32, 1
        %s693 = scalar_lea.sflag [#allocation12], %s692
        %s694 = sand.u32 %s264, 1
        %s695 = smul.addr %s694, 8
        %s696 = scalar_lea.vmem [#allocation13], %s695
        // Predicated region
        $region65: #{tpu_custom_call.1} parent=47 // pred_check
          %p697 = pneg %p218
        $region66: #{tpu_custom_call.1} parent=47 // pred_check_branch
          %699 = sbr.rel (%p697) target = $region68
        $region67: #{tpu_custom_call.1} parent=47 // pred_region
          %s701 = ssub.s32 128, 128
          %702 = vsyncadd %s683, %s701
          %s703 = sadd.s32 %s37, %s36
          %s704 = smul.addr %s703, 128
          %s705 = scalar_lea.hbm %s7, %s704
          %s707 = sshll.u32 %s686, 4
          %s708 = int_to_ptr.vmem [resolvable:$true] %s707
          %710 = dma.vmem_to_hbm [thread:$0]  %s708, 128, %s705, %s683
        $region68: #{tpu_custom_call.1} parent=47 // pred_fallthru
          _
        // Predicated region
        $region69: #{tpu_custom_call.1} parent=47 // pred_check
          %p711 = pneg %p246
        $region70: #{tpu_custom_call.1} parent=47 // pred_check_branch
          %713 = sbr.rel (%p711) target = $region72
        $region71: #{tpu_custom_call.1} parent=47 // pred_region
          %s715 = ssub.s32 128, 128
          %716 = vsyncadd %s688, %s715
          %s717 = sadd.s32 %s37, %s36
          %s718 = smul.addr %s717, 128
          %s719 = scalar_lea.hbm %s8, %s718
          %s721 = sshll.u32 %s691, 4
          %s722 = int_to_ptr.vmem [resolvable:$true] %s721
          %724 = dma.vmem_to_hbm [thread:$0]  %s722, 128, %s719, %s688
        $region72: #{tpu_custom_call.1} parent=47 // pred_fallthru
          _
        // Predicated region
        $region73: #{tpu_custom_call.1} parent=47 // pred_check
          %p725 = pneg %p274
        $region74: #{tpu_custom_call.1} parent=47 // pred_check_branch
          %727 = sbr.rel (%p725) target = $region76
        $region75: #{tpu_custom_call.1} parent=47 // pred_region
          %s729 = ssub.s32 128, 128
          %730 = vsyncadd %s693, %s729
          %s731 = sadd.s32 %s37, %s36
          %s732 = smul.addr %s731, 128
          %s733 = scalar_lea.hbm %s9, %s732
          %s735 = sshll.u32 %s696, 4
          %s736 = int_to_ptr.vmem [resolvable:$true] %s735
          %738 = dma.vmem_to_hbm [thread:$0]  %s736, 128, %s733, %s693
        $region76: #{tpu_custom_call.1} parent=47 // pred_fallthru
          _
      $region48: #{tpu_custom_call.1} parent=5 // pred_fallthru
        _
      %p739 = scmp.le.s32.totalorder 2, %s27
      // Predicated region
      $region77: #{tpu_custom_call.1} parent=5 // pred_check
        %p740 = pneg %p739
      $region78: #{tpu_custom_call.1} parent=5 // pred_check_branch
        %742 = sbr.rel (%p740) target = $region80
      $region79: #{tpu_custom_call.1} parent=5 // pred_region
        %s743 = ssub.s32 %s27, 2
        // Predicated region
        $region81: #{tpu_custom_call.1} parent=79 // pred_check
          %p744 = pneg %p224
        $region82: #{tpu_custom_call.1} parent=79 // pred_check_branch
          %746 = sbr.rel (%p744) target = $region84
        $region83: #{tpu_custom_call.1} parent=79 // pred_region
          %s747 = sand.u32 %s209, 1
          %s748 = scalar_lea.sflag [#allocation4], %s747
          %s749 = sand.u32 %s209, 1
          %s750 = smul.addr %s749, 8
          %s751 = scalar_lea.vmem [#allocation10], %s750
          %752 = dma.done %s748, 128
        $region84: #{tpu_custom_call.1} parent=79 // pred_fallthru
          _
        // Predicated region
        $region85: #{tpu_custom_call.1} parent=79 // pred_check
          %p753 = pneg %p252
        $region86: #{tpu_custom_call.1} parent=79 // pred_check_branch
          %755 = sbr.rel (%p753) target = $region88
        $region87: #{tpu_custom_call.1} parent=79 // pred_region
          %s756 = sand.u32 %s33, 1
          %s757 = scalar_lea.sflag [#allocation12], %s756
          %s758 = sand.u32 %s237, 1
          %s759 = smul.addr %s758, 8
          %s760 = scalar_lea.vmem [#allocation11], %s759
          %761 = dma.done %s757, 128
        $region88: #{tpu_custom_call.1} parent=79 // pred_fallthru
          _
        // Predicated region
        $region89: #{tpu_custom_call.1} parent=79 // pred_check
          %p762 = pneg %p280
        $region90: #{tpu_custom_call.1} parent=79 // pred_check_branch
          %764 = sbr.rel (%p762) target = $region92
        $region91: #{tpu_custom_call.1} parent=79 // pred_region
          %s765 = sand.u32 %s33, 1
          %s766 = scalar_lea.sflag [#allocation12], %s765
          %s767 = sand.u32 %s265, 1
          %s768 = smul.addr %s767, 8
          %s769 = scalar_lea.vmem [#allocation13], %s768
          %770 = dma.done %s766, 128
        $region92: #{tpu_custom_call.1} parent=79 // pred_fallthru
          _
      $region80: #{tpu_custom_call.1} parent=5 // pred_fallthru
        _
    $region6: #{tpu_custom_call.1} parent=1 // loop_footer
      %s31 = sadd.s32 1, %s27
    $region7: #{tpu_custom_call.1} parent=1 // loop_footer_branch
      %26 = sbr.rel target = $region3
    $region8: #{tpu_custom_call.1} parent=1 // loop_exit
      _
    %771 = vsyncpa [#allocation3], 1
    %s772 = scalar_lea.sflag [#allocation3], 1
    %773 = vsyncpa %s772, 1
    %774 = vsyncpa [#allocation6], 1
    %775 = vsyncpa [#allocation9], 1
    %776 = vsyncpa [#allocation4], 1
    %s777 = scalar_lea.sflag [#allocation4], 1
    %778 = vsyncpa %s777, 1
    %779 = vsyncpa [#allocation12], 1
    %s780 = scalar_lea.sflag [#allocation12], 1
    %781 = vsyncpa %s780, 1

// kernel: tpu_custom_call.1
$region0: #{tpu_custom_call.1}
  #allocation0 [shape = 'u32[]', space=smem, size = 0x4, offset = 0x4, fixed_abs, tag = 'smem constant byte address 0x4 - core index']
  #allocation1 [shape = 'u32[144,128]{1,0:T(1,128)}', space=vmem, size = 0x12000, scoped, tag = 'internal scratch']
  %s0 = inlined_call_operand.hbm [shape: f32[2,8,32], index: 0, kind: input, shape index: {}]
  %s1 = inlined_call_operand.hbm [shape: f32[32,32], index: 1, kind: input, shape index: {}]
  %s2 = inlined_call_operand.vmem [shape: f32[1,32], index: 2, kind: input, shape index: {}]
  %s3 = inlined_call_operand.hbm [shape: f32[32,32], index: 3, kind: input, shape index: {}]
  %s4 = inlined_call_operand.vmem [shape: f32[1,32], index: 4, kind: input, shape index: {}]
  %s5 = inlined_call_operand.hbm [shape: f32[32,32], index: 5, kind: input, shape index: {}]
  %s6 = inlined_call_operand.vmem [shape: f32[1,32], index: 6, kind: input, shape index: {}]
  %s7 = inlined_call_operand.hbm [shape: f32[2,8,32], index: 7, kind: output, shape index: {0}]
  %s8 = inlined_call_operand.hbm [shape: f32[2,8,32], index: 8, kind: output, shape index: {1}]
  %s9 = inlined_call_operand.hbm [shape: f32[2,8,32], index: 9, kind: output, shape index: {2}]
  %10 = xla_tuple %s7, %s8, %s9
  %s11 = sld [smem:[#allocation0]]
  $region93: #{tpu_custom_call.1} parent=0
    _
  %s13 = ssub.s32 1, %s11
  %s14 = scalar_select 0, %s13, %s11
  $region1: #{tpu_custom_call.1} parent=0
    #allocation2 [shape = 'u8[8192]{0}', space=vmem, size = 0x2000, scoped, tag = 'input window, operand 0']
    #allocation3 [shape = 's32[2]{0}', space=sflag, size = 0x8, scoped, tag = 'scoped memory for tpu_custom_call.1']
    #allocation4 [shape = 's32[2]{0}', space=sflag, size = 0x8, scoped, tag = 'scoped memory for tpu_custom_call.1']
    #allocation5 [shape = 'u8[16384]{0}', space=vmem, size = 0x4000, scoped, tag = 'input window, operand 1, single buffered']
    #allocation6 [shape = 's32[1]{0}', space=sflag, size = 0x4, scoped, tag = 'scoped memory for tpu_custom_call.1']
    #allocation7 [shape = 'u8[16384]{0}', space=vmem, size = 0x4000, scoped, tag = 'input window, operand 3, single buffered']
    #allocation8 [shape = 'u8[16384]{0}', space=vmem, size = 0x4000, scoped, tag = 'input window, operand 5, single buffered']
    #allocation9 [shape = 's32[1]{0}', space=sflag, size = 0x4, scoped, tag = 'scoped memory for tpu_custom_call.1']
    #allocation10 [shape = 'u8[8192]{0}', space=vmem, size = 0x2000, scoped, tag = 'output window, operand 0']
    #allocation11 [shape = 'u8[8192]{0}', space=vmem, size = 0x2000, scoped, tag = 'output window, operand 1']
    #allocation12 [shape = 's32[2]{0}', space=sflag, size = 0x8, scoped, tag = 'scoped memory for tpu_custom_call.1']
    #allocation13 [shape = 'u8[8192]{0}', space=vmem, size = 0x2000, scoped, tag = 'output window, operand 2']
    %15 = vsyncpa [#allocation3], 0
    %s16 = scalar_lea.sflag [#allocation3], 1
    %17 = vsyncpa %s16, 0
    %18 = vsyncpa [#allocation6], 0
    %19 = vsyncpa [#allocation9], 0
    %20 = vsyncpa [#allocation4], 0
    %s21 = scalar_lea.sflag [#allocation4], 1
    %22 = vsyncpa %s21, 0
    %23 = vsyncpa [#allocation12], 0
    %s24 = scalar_lea.sflag [#allocation12], 1
    %25 = vsyncpa %s24, 0
    loop: start=0, step=1, limit=4
    $region2: #{tpu_custom_call.1} parent=1 // loop_pre_header
      _
    $region3: #{tpu_custom_call.1} parent=1 // loop_header
      %s27 = sphi 0, %s31
      %p28 = scmp.ge.s32.totalorder %s27, 4
      %s34 = sphi 0, %s46
      %s35 = sphi 0, %s42
      %s36 = sphi 0, %s34
      %s37 = sphi 0, %s35
      %s38 = sphi 0, %s36
      %s39 = sphi 0, %s37
      %s51 = sphi 0, %s53
      %s54 = sphi 0, %s51
      %s55 = sphi 0, %s54
      %s71 = sphi 0, %s55
      %s75 = sphi 0, %s75
      %s77 = sphi 0, %s75
      %s78 = sphi 0, %s77
      %s92 = sphi 0, %s78
      %s96 = sphi 0, %s96
      %s98 = sphi 0, %s96
      %s99 = sphi 0, %s98
      %s113 = sphi 0, %s99
      %s117 = sphi 0, %s117
      %s119 = sphi 0, %s117
      %s120 = sphi 0, %s119
      %s134 = sphi 0, %s120
      %s138 = sphi 0, %s138
      %s140 = sphi 0, %s138
      %s141 = sphi 0, %s140
      %s155 = sphi 0, %s141
      %s159 = sphi 0, %s159
      %s161 = sphi 0, %s159
      %s162 = sphi 0, %s161
      %s176 = sphi 0, %s162
      %s180 = sphi 0, %s180
      %s182 = sphi 0, %s180
      %s183 = sphi 0, %s182
      %s197 = sphi 0, %s183
      %s205 = sphi 0, %s207
      %s208 = sphi 0, %s205
      %s209 = sphi 0, %s208
      %s225 = sphi 0, %s209
      %s233 = sphi 0, %s235
      %s236 = sphi 0, %s233
      %s237 = sphi 0, %s236
      %s253 = sphi 0, %s237
      %s261 = sphi 0, %s263
      %s264 = sphi 0, %s261
      %s265 = sphi 0, %s264
      %s281 = sphi 0, %s265
    $region4: #{tpu_custom_call.1} parent=1 // loop_header_branch
      %30 = sbr.rel (%p28) target = $region8
    $region5: #{tpu_custom_call.1} parent=1 // loop_body
      %s32 = ssub.s32 %s27, 1
      %s33 = ssub.s32 %s27, 2
      %s40 = sadd.s32 1, %s35
      %p41 = scmp.ge.s32.totalorder %s40, 1
      %s42 = scalar_select %p41, 0, %s40
      %s43 = sadd.s32 1, %s34
      %s44 = scalar_select %p41, %s43, %s34
      %p45 = scmp.ge.s32.totalorder %s44, 2
      %s46 = scalar_select %p45, 0, %s44
      %s47 = ssub.s32 %s34, %s46
      %s48 = ssub.s32 %s35, %s42
      %s49 = sor.u32 %s47, %s48
      %p50 = scmp.eq.s32.totalorder %s49, 0
      %s52 = sadd.s32 %s51, 1
      %s53 = scalar_select %p50, %s51, %s52
      %p56 = pneg %p50
      %p57 = scmp.eq.s32.totalorder %s27, 1
      %p58 = por %p56, %p57
      %p59 = scmp.ne.s32.totalorder %s51, %s54
      %p60 = scmp.eq.s32.totalorder %s27, 0
      %p61 = por %p59, %p60
      %p62 = scmp.ne.s32.totalorder %s51, %s54
      %p63 = scmp.eq.s32.totalorder %s32, 1
      %p64 = por %p62, %p63
      %p65 = scmp.ne.s32.totalorder %s54, %s55
      %p66 = scmp.eq.s32.totalorder %s32, 0
      %p67 = por %p65, %p66
      %p68 = scmp.ne.s32.totalorder %s54, %s55
      %p69 = scmp.eq.s32.totalorder %s33, 1
      %p70 = por %p68, %p69
      %p72 = scmp.ne.s32.totalorder %s55, %s71
      %p73 = scmp.eq.s32.totalorder %s33, 0
      %p74 = por %p72, %p73
      %s76 = sadd.s32 %s75, 1
      %p79 = scmp.eq.s32.totalorder %s27, 1
      %p80 = scmp.ne.s32.totalorder %s75, %s77
      %p81 = scmp.eq.s32.totalorder %s27, 0
      %p82 = por %p80, %p81
      %p83 = scmp.ne.s32.totalorder %s75, %s77
      %p84 = scmp.eq.s32.totalorder %s32, 1
      %p85 = por %p83, %p84
      %p86 = scmp.ne.s32.totalorder %s77, %s78
      %p87 = scmp.eq.s32.totalorder %s32, 0
      %p88 = por %p86, %p87
      %p89 = scmp.ne.s32.totalorder %s77, %s78
      %p90 = scmp.eq.s32.totalorder %s33, 1
      %p91 = por %p89, %p90
      %p93 = scmp.ne.s32.totalorder %s78, %s92
      %p94 = scmp.eq.s32.totalorder %s33, 0
      %p95 = por %p93, %p94
      %s97 = sadd.s32 %s96, 1
      %p100 = scmp.eq.s32.totalorder %s27, 1
      %p101 = scmp.ne.s32.totalorder %s96, %s98
      %p102 = scmp.eq.s32.totalorder %s27, 0
      %p103 = por %p101, %p102
      %p104 = scmp.ne.s32.totalorder %s96, %s98
      %p105 = scmp.eq.s32.totalorder %s32, 1
      %p106 = por %p104, %p105
      %p107 = scmp.ne.s32.totalorder %s98, %s99
      %p108 = scmp.eq.s32.totalorder %s32, 0
      %p109 = por %p107, %p108
      %p110 = scmp.ne.s32.totalorder %s98, %s99
      %p111 = scmp.eq.s32.totalorder %s33, 1
      %p112 = por %p110, %p111
      %p114 = scmp.ne.s32.totalorder %s99, %s113
      %p115 = scmp.eq.s32.totalorder %s33, 0
      %p116 = por %p114, %p115
      %s118 = sadd.s32 %s117, 1
      %p121 = scmp.eq.s32.totalorder %s27, 1
      %p122 = scmp.ne.s32.totalorder %s117, %s119
      %p123 = scmp.eq.s32.totalorder %s27, 0
      %p124 = por %p122, %p123
      %p125 = scmp.ne.s32.totalorder %s117, %s119
      %p126 = scmp.eq.s32.totalorder %s32, 1
      %p127 = por %p125, %p126
      %p128 = scmp.ne.s32.totalorder %s119, %s120
      %p129 = scmp.eq.s32.totalorder %s32, 0
      %p130 = por %p128, %p129
      %p131 = scmp.ne.s32.totalorder %s119, %s120
      %p132 = scmp.eq.s32.totalorder %s33, 1
      %p133 = por %p131, %p132
      %p135 = scmp.ne.s32.totalorder %s120, %s134
      %p136 = scmp.eq.s32.totalorder %s33, 0
      %p137 = por %p135, %p136
      %s139 = sadd.s32 %s138, 1
      %p142 = scmp.eq.s32.totalorder %s27, 1
      %p143 = scmp.ne.s32.totalorder %s138, %s140
      %p144 = scmp.eq.s32.totalorder %s27, 0
      %p145 = por %p143, %p144
      %p146 = scmp.ne.s32.totalorder %s138, %s140
      %p147 = scmp.eq.s32.totalorder %s32, 1
      %p148 = por %p146, %p147
      %p149 = scmp.ne.s32.totalorder %s140, %s141
      %p150 = scmp.eq.s32.totalorder %s32, 0
      %p151 = por %p149, %p150
      %p152 = scmp.ne.s32.totalorder %s140, %s141
      %p153 = scmp.eq.s32.totalorder %s33, 1
      %p154 = por %p152, %p153
      %p156 = scmp.ne.s32.totalorder %s141, %s155
      %p157 = scmp.eq.s32.totalorder %s33, 0
      %p158 = por %p156, %p157
      %s160 = sadd.s32 %s159, 1
      %p163 = scmp.eq.s32.totalorder %s27, 1
      %p164 = scmp.ne.s32.totalorder %s159, %s161
      %p165 = scmp.eq.s32.totalorder %s27, 0
      %p166 = por %p164, %p165
      %p167 = scmp.ne.s32.totalorder %s159, %s161
      %p168 = scmp.eq.s32.totalorder %s32, 1
      %p169 = por %p167, %p168
      %p170 = scmp.ne.s32.totalorder %s161, %s162
      %p171 = scmp.eq.s32.totalorder %s32, 0
      %p172 = por %p170, %p171
      %p173 = scmp.ne.s32.totalorder %s161, %s162
      %p174 = scmp.eq.s32.totalorder %s33, 1
      %p175 = por %p173, %p174
      %p177 = scmp.ne.s32.totalorder %s162, %s176
      %p178 = scmp.eq.s32.totalorder %s33, 0
      %p179 = por %p177, %p178
      %s181 = sadd.s32 %s180, 1
      %p184 = scmp.eq.s32.totalorder %s27, 1
      %p185 = scmp.ne.s32.totalorder %s180, %s182
      %p186 = scmp.eq.s32.totalorder %s27, 0
      %p187 = por %p185, %p186
      %p188 = scmp.ne.s32.totalorder %s180, %s182
      %p189 = scmp.eq.s32.totalorder %s32, 1
      %p190 = por %p188, %p189
      %p191 = scmp.ne.s32.totalorder %s182, %s183
      %p192 = scmp.eq.s32.totalorder %s32, 0
      %p193 = por %p191, %p192
      %p194 = scmp.ne.s32.totalorder %s182, %s183
      %p195 = scmp.eq.s32.totalorder %s33, 1
      %p196 = por %p194, %p195
      %p198 = scmp.ne.s32.totalorder %s183, %s197
      %p199 = scmp.eq.s32.totalorder %s33, 0
      %p200 = por %p198, %p199
      %s201 = ssub.s32 %s34, %s46
      %s202 = ssub.s32 %s35, %s42
      %s203 = sor.u32 %s201, %s202
      %p204 = scmp.eq.s32.totalorder %s203, 0
      %s206 = sadd.s32 %s205, 1
      %s207 = scalar_select %p204, %s205, %s206
      %p210 = pneg %p204
      %p211 = scmp.eq.s32.totalorder %s27, 1
      %p212 = por %p210, %p211
      %p213 = scmp.ne.s32.totalorder %s205, %s208
      %p214 = scmp.eq.s32.totalorder %s27, 0
      %p215 = por %p213, %p214
      %p216 = scmp.ne.s32.totalorder %s205, %s208
      %p217 = scmp.eq.s32.totalorder %s32, 1
      %p218 = por %p216, %p217
      %p219 = scmp.ne.s32.totalorder %s208, %s209
      %p220 = scmp.eq.s32.totalorder %s32, 0
      %p221 = por %p219, %p220
      %p222 = scmp.ne.s32.totalorder %s208, %s209
      %p223 = scmp.eq.s32.totalorder %s33, 1
      %p224 = por %p222, %p223
      %p226 = scmp.ne.s32.totalorder %s209, %s225
      %p227 = scmp.eq.s32.totalorder %s33, 0
      %p228 = por %p226, %p227
      %s229 = ssub.s32 %s34, %s46
      %s230 = ssub.s32 %s35, %s42
      %s231 = sor.u32 %s229, %s230
      %p232 = scmp.eq.s32.totalorder %s231, 0
      %s234 = sadd.s32 %s233, 1
      %s235 = scalar_select %p232, %s233, %s234
      %p238 = pneg %p232
      %p239 = scmp.eq.s32.totalorder %s27, 1
      %p240 = por %p238, %p239
      %p241 = scmp.ne.s32.totalorder %s233, %s236
      %p242 = scmp.eq.s32.totalorder %s27, 0
      %p243 = por %p241, %p242
      %p244 = scmp.ne.s32.totalorder %s233, %s236
      %p245 = scmp.eq.s32.totalorder %s32, 1
      %p246 = por %p244, %p245
      %p247 = scmp.ne.s32.totalorder %s236, %s237
      %p248 = scmp.eq.s32.totalorder %s32, 0
      %p249 = por %p247, %p248
      %p250 = scmp.ne.s32.totalorder %s236, %s237
      %p251 = scmp.eq.s32.totalorder %s33, 1
      %p252 = por %p250, %p251
      %p254 = scmp.ne.s32.totalorder %s237, %s253
      %p255 = scmp.eq.s32.totalorder %s33, 0
      %p256 = por %p254, %p255
      %s257 = ssub.s32 %s34, %s46
      %s258 = ssub.s32 %s35, %s42
      %s259 = sor.u32 %s257, %s258
      %p260 = scmp.eq.s32.totalorder %s259, 0
      %s262 = sadd.s32 %s261, 1
      %s263 = scalar_select %p260, %s261, %s262
      %p266 = pneg %p260
      %p267 = scmp.eq.s32.totalorder %s27, 1
      %p268 = por %p266, %p267
      %p269 = scmp.ne.s32.totalorder %s261, %s264
      %p270 = scmp.eq.s32.totalorder %s27, 0
      %p271 = por %p269, %p270
      %p272 = scmp.ne.s32.totalorder %s261, %s264
      %p273 = scmp.eq.s32.totalorder %s32, 1
      %p274 = por %p272, %p273
      %p275 = scmp.ne.s32.totalorder %s264, %s265
      %p276 = scmp.eq.s32.totalorder %s32, 0
      %p277 = por %p275, %p276
      %p278 = scmp.ne.s32.totalorder %s264, %s265
      %p279 = scmp.eq.s32.totalorder %s33, 1
      %p280 = por %p278, %p279
      %p282 = scmp.ne.s32.totalorder %s265, %s281
      %p283 = scmp.eq.s32.totalorder %s33, 0
      %p284 = por %p282, %p283
      %p285 = scmp.le.s32.totalorder 1, %s27
      %p286 = scmp.lt.s32.totalorder %s27, 3
      %p287 = pnand %p285, %p286
      %p288 = pneg %p287
      // Predicated region
      $region9: #{tpu_custom_call.1} parent=5 // pred_check
        _
      $region10: #{tpu_custom_call.1} parent=5 // pred_check_branch
        %290 = sbr.rel (%p287) target = $region12
      $region11: #{tpu_custom_call.1} parent=5 // pred_region
        %s291 = ssub.s32 %s27, 1
        // Predicated region
        $region13: #{tpu_custom_call.1} parent=11 // pred_check
          %p292 = pneg %p88
        $region14: #{tpu_custom_call.1} parent=11 // pred_check_branch
          %294 = sbr.rel (%p292) target = $region16
        $region15: #{tpu_custom_call.1} parent=11 // pred_region
          %s296 = ssub.s32 512, 512
          %297 = vsyncadd [#allocation6], %s296
          %s298 = sshll.u32 [#allocation5], 4
          %s299 = int_to_ptr.vmem [resolvable:$true] %s298
          %304 = dma.hbm_to_vmem [thread:$0]  %s1, 512, %s299, [#allocation6], 128, 128, 8
        $region16: #{tpu_custom_call.1} parent=11 // pred_fallthru
          _
        // Predicated region
        $region17: #{tpu_custom_call.1} parent=11 // pred_check
          %p305 = pneg %p109
        $region18: #{tpu_custom_call.1} parent=11 // pred_check_branch
          %307 = sbr.rel (%p305) target = $region20
        $region19: #{tpu_custom_call.1} parent=11 // pred_region
          _
        $region20: #{tpu_custom_call.1} parent=11 // pred_fallthru
          _
        // Predicated region
        $region21: #{tpu_custom_call.1} parent=11 // pred_check
          %p308 = pneg %p130
        $region22: #{tpu_custom_call.1} parent=11 // pred_check_branch
          %310 = sbr.rel (%p308) target = $region24
        $region23: #{tpu_custom_call.1} parent=11 // pred_region
          %s312 = ssub.s32 512, 512
          %313 = vsyncadd [#allocation6], %s312
          %s314 = sshll.u32 [#allocation7], 4
          %s315 = int_to_ptr.vmem [resolvable:$true] %s314
          %320 = dma.hbm_to_vmem [thread:$0]  %s3, 512, %s315, [#allocation6], 128, 128, 8
        $region24: #{tpu_custom_call.1} parent=11 // pred_fallthru
          _
        // Predicated region
        $region25: #{tpu_custom_call.1} parent=11 // pred_check
          %p321 = pneg %p151
        $region26: #{tpu_custom_call.1} parent=11 // pred_check_branch
          %323 = sbr.rel (%p321) target = $region28
        $region27: #{tpu_custom_call.1} parent=11 // pred_region
          _
        $region28: #{tpu_custom_call.1} parent=11 // pred_fallthru
          _
        // Predicated region
        $region29: #{tpu_custom_call.1} parent=11 // pred_check
          %p324 = pneg %p172
        $region30: #{tpu_custom_call.1} parent=11 // pred_check_branch
          %326 = sbr.rel (%p324) target = $region32
        $region31: #{tpu_custom_call.1} parent=11 // pred_region
          %s328 = ssub.s32 512, 512
          %329 = vsyncadd [#allocation9], %s328
          %s330 = sshll.u32 [#allocation8], 4
          %s331 = int_to_ptr.vmem [resolvable:$true] %s330
          %336 = dma.hbm_to_vmem [thread:$0]  %s5, 512, %s331, [#allocation9], 128, 128, 8
        $region32: #{tpu_custom_call.1} parent=11 // pred_fallthru
          _
        // Predicated region
        $region33: #{tpu_custom_call.1} parent=11 // pred_check
          %p337 = pneg %p193
        $region34: #{tpu_custom_call.1} parent=11 // pred_check_branch
          %339 = sbr.rel (%p337) target = $region36
        $region35: #{tpu_custom_call.1} parent=11 // pred_region
          _
        $region36: #{tpu_custom_call.1} parent=11 // pred_fallthru
          _
      $region12: #{tpu_custom_call.1} parent=5 // pred_fallthru
        _
      %p340 = scmp.lt.s32.totalorder %s27, 2
      // Predicated region
      $region37: #{tpu_custom_call.1} parent=5 // pred_check
        %p341 = pneg %p340
      $region38: #{tpu_custom_call.1} parent=5 // pred_check_branch
        %343 = sbr.rel (%p341) target = $region40
      $region39: #{tpu_custom_call.1} parent=5 // pred_region
        // Predicated region
        $region41: #{tpu_custom_call.1} parent=39 // pred_check
          %p344 = pneg %p61
        $region42: #{tpu_custom_call.1} parent=39 // pred_check_branch
          %346 = sbr.rel (%p344) target = $region44
        $region43: #{tpu_custom_call.1} parent=39 // pred_region
          %s347 = sand.u32 %s51, 1
          %s348 = scalar_lea.sflag [#allocation3], %s347
          %s349 = sand.u32 %s51, 1
          %s350 = smul.addr %s349, 8
          %s351 = scalar_lea.vmem [#allocation2], %s350
          %s353 = ssub.s32 128, 128
          %354 = vsyncadd %s348, %s353
          %s355 = sadd.s32 %s35, %s34
          %s356 = smul.addr %s355, 128
          %s357 = scalar_lea.hbm %s0, %s356
          %s359 = sshll.u32 %s351, 4
          %s360 = int_to_ptr.vmem [resolvable:$true] %s359
          %362 = dma.hbm_to_vmem [thread:$0]  %s357, 128, %s360, %s348
        $region44: #{tpu_custom_call.1} parent=39 // pred_fallthru
          _
      $region40: #{tpu_custom_call.1} parent=5 // pred_fallthru
        _
      %p363 = scmp.le.s32.totalorder 1, %s27
      %p364 = scmp.lt.s32.totalorder %s27, 3
      %p365 = pnand %p363, %p364
      %p366 = pneg %p365
      // Predicated region
      $region45: #{tpu_custom_call.1} parent=5 // pred_check
        _
      $region46: #{tpu_custom_call.1} parent=5 // pred_check_branch
        %368 = sbr.rel (%p365) target = $region48
      $region47: #{tpu_custom_call.1} parent=5 // pred_region
        %s369 = ssub.s32 %s27, 1
        %s370 = sand.u32 %s54, 1
        %s371 = scalar_lea.sflag [#allocation3], %s370
        %s372 = sand.u32 %s54, 1
        %s373 = smul.addr %s372, 8
        %s374 = scalar_lea.vmem [#allocation2], %s373
        // Predicated region
        $region49: #{tpu_custom_call.1} parent=47 // pred_check
          %p375 = pneg %p67
        $region50: #{tpu_custom_call.1} parent=47 // pred_check_branch
          %377 = sbr.rel (%p375) target = $region52
        $region51: #{tpu_custom_call.1} parent=47 // pred_region
          %378 = dma.done %s371, 128
        $region52: #{tpu_custom_call.1} parent=47 // pred_fallthru
          _
        // Predicated region
        $region53: #{tpu_custom_call.1} parent=47 // pred_check
          %p379 = pneg %p88
        $region54: #{tpu_custom_call.1} parent=47 // pred_check_branch
          %381 = sbr.rel (%p379) target = $region56
        $region55: #{tpu_custom_call.1} parent=47 // pred_region
          %382 = dma.done [#allocation6], 512
        $region56: #{tpu_custom_call.1} parent=47 // pred_fallthru
          _
        // Predicated region
        $region57: #{tpu_custom_call.1} parent=47 // pred_check
          %p383 = pneg %p130
        $region58: #{tpu_custom_call.1} parent=47 // pred_check_branch
          %385 = sbr.rel (%p383) target = $region60
        $region59: #{tpu_custom_call.1} parent=47 // pred_region
          %386 = dma.done [#allocation6], 512
        $region60: #{tpu_custom_call.1} parent=47 // pred_fallthru
          _
        // Predicated region
        $region61: #{tpu_custom_call.1} parent=47 // pred_check
          %p387 = pneg %p172
        $region62: #{tpu_custom_call.1} parent=47 // pred_check_branch
          %389 = sbr.rel (%p387) target = $region64
        $region63: #{tpu_custom_call.1} parent=47 // pred_region
          %390 = dma.done [#allocation9], 512
        $region64: #{tpu_custom_call.1} parent=47 // pred_fallthru
          _
        %s391 = sand.u32 %s54, 1
        %s392 = scalar_lea.sflag [#allocation3], %s391
        %s393 = sand.u32 %s54, 1
        %s394 = smul.addr %s393, 8
        %s395 = scalar_lea.vmem [#allocation2], %s394
        %p396 = pneg %p67
        %p397 = pneg %p64
        %p398 = pneg %p88
        %p399 = pneg %p85
        %p400 = pneg %p109
        %p401 = pneg %p106
        %p402 = pneg %p130
        %p403 = pneg %p127
        %p404 = pneg %p151
        %p405 = pneg %p148
        %p406 = pneg %p172
        %p407 = pneg %p169
        %p408 = pneg %p193
        %p409 = pneg %p190
        %p410 = pneg %p221
        %p411 = pneg %p218
        %s412 = sand.u32 %s208, 1
        %s413 = scalar_lea.sflag [#allocation4], %s412
        %s414 = sand.u32 %s208, 1
        %s415 = smul.addr %s414, 8
        %s416 = scalar_lea.vmem [#allocation10], %s415
        %p417 = pneg %p249
        %p418 = pneg %p246
        %s419 = sand.u32 %s32, 1
        %s420 = scalar_lea.sflag [#allocation12], %s419
        %s421 = sand.u32 %s236, 1
        %s422 = smul.addr %s421, 8
        %s423 = scalar_lea.vmem [#allocation11], %s422
        %p424 = pneg %p277
        %p425 = pneg %p274
        %s426 = sand.u32 %s32, 1
        %s427 = scalar_lea.sflag [#allocation12], %s426
        %s428 = sand.u32 %s264, 1
        %s429 = smul.addr %s428, 8
        %s430 = scalar_lea.vmem [#allocation13], %s429
        %v431 = vld [vmem:[%s374] sm:$0xff]
        %v432 = vld [vmem:[#allocation5] sm:$0xff]
        %v433 = vld [vmem:[#allocation5 + $0x8] sm:$0xff]
        %v434 = vld [vmem:[#allocation5 + $0x10] sm:$0xff]
        %v435 = vld [vmem:[#allocation5 + $0x18] sm:$0xff]
        %v436 = vld [vmem:[%s2] sm:$0x1]
        %v438 = vlaneseq
        %v439 = vshrl.u32 %v438, 7
        %v440 = vsub.s32 0, %v439
        %v441 = vrot.slane %v436, %v440
        %vm443 = vcmask 261120
        %v445 = vsel %vm443, %v431, 0
        %447 = vmatprep.subr.mxu0 0.0
        %448 = vmatpush1.msra.mxu0 0.0
        %449 = vmatprep.subr.mxu0 0.0
        %450 = vmatpush1.msra.mxu0 0.0
        %451 = vmatprep.subr.mxu0 0.0
        %452 = vmatpush1.msra.mxu0 0.0
        %453 = vmatprep.subr.mxu0 0.0
        %454 = vmatpush1.msra.mxu0 0.0
        %455 = vmatprep.subr.mxu0 0.0
        %456 = vmatpush1.msra.mxu0 0.0
        %457 = vmatprep.subr.mxu0 0.0
        %458 = vmatpush1.msra.mxu0 0.0
        %459 = vmatprep.subr.mxu0 0.0
        %460 = vmatpush1.msra.mxu0 0.0
        %461 = vmatprep.subr.mxu0 0.0
        %462 = vmatpush1.msra.mxu0 0.0
        %463 = vmatprep.subr.mxu0 0.0
        %464 = vmatpush1.msra.mxu0 0.0
        %465 = vmatprep.subr.mxu0 0.0
        %466 = vmatpush1.msra.mxu0 0.0
        %467 = vmatprep.subr.mxu0 0.0
        %468 = vmatpush1.msra.mxu0 0.0
        %469 = vmatprep.subr.mxu0 0.0
        %470 = vmatpush1.msra.mxu0 0.0
        %471 = vmatprep.subr.mxu0 0.0
        %472 = vmatpush1.msra.mxu0 %v435
        %473 = vmatprep.subr.mxu0 0.0
        %474 = vmatpush1.msra.mxu0 %v434
        %475 = vmatprep.subr.mxu0 0.0
        %476 = vmatpush1.msra.mxu0 %v433
        %477 = vmatprep.subr.mxu0 0.0
        %478 = vmatpush1.msra.mxu0 %v432
        %479 = vmatprep.subr.mxu0 0.0
        %480 = vmatpush2.msra.mxu0 0.0
        %481 = vmatprep.subr.mxu0 0.0
        %482 = vmatpush2.msra.mxu0 0.0
        %483 = vmatprep.subr.mxu0 0.0
        %484 = vmatpush2.msra.mxu0 0.0
        %485 = vmatprep.subr.mxu0 0.0
        %486 = vmatpush2.msra.mxu0 0.0
        %487 = vmatprep.subr.mxu0 0.0
        %488 = vmatpush2.msra.mxu0 0.0
        %489 = vmatprep.subr.mxu0 0.0
        %490 = vmatpush2.msra.mxu0 0.0
        %491 = vmatprep.subr.mxu0 0.0
        %492 = vmatpush2.msra.mxu0 0.0
        %493 = vmatprep.subr.mxu0 0.0
        %494 = vmatpush2.msra.mxu0 0.0
        %495 = vmatprep.subr.mxu0 0.0
        %496 = vmatpush2.msra.mxu0 0.0
        %497 = vmatprep.subr.mxu0 0.0
        %498 = vmatpush2.msra.mxu0 0.0
        %499 = vmatprep.subr.mxu0 0.0
        %500 = vmatpush2.msra.mxu0 0.0
        %501 = vmatprep.subr.mxu0 0.0
        %502 = vmatpush2.msra.mxu0 0.0
        %503 = vmatprep.subr.mxu0 0.0
        %504 = vmatpush2.msra.mxu0 0.0
        %505 = vmatprep.subr.mxu0 0.0
        %506 = vmatpush2.msra.mxu0 0.0
        %507 = vmatprep.subr.mxu0 0.0
        %508 = vmatpush2.msra.mxu0 0.0
        %509 = vmatprep.subr.mxu0 0.0
        %510 = vmatpush2.msra.mxu0 0.0
        %511 = vmatprep.mubr.f32.mxu0 0.0
        %512 = vmatmul.mubr.f32.gmra.mxu0 %v445
        %v513 = vpop.f32.mrf.mxu0
        %v514 = vadd.f32 %v441, %v513
        %v515 = vpop.f32.mrf.mxu0
        %516 = vdwg.mxu0
        %517 = vst.msk [vmem:[%s416] sm:$0xff] %vm443, %v514
        %v518 = vld [vmem:[#allocation7] sm:$0xff]
        %v519 = vld [vmem:[#allocation7 + $0x8] sm:$0xff]
        %v520 = vld [vmem:[#allocation7 + $0x10] sm:$0xff]
        %v521 = vld [vmem:[#allocation7 + $0x18] sm:$0xff]
        %v522 = vld [vmem:[%s4] sm:$0x1]
        %v524 = vlaneseq
        %v525 = vshrl.u32 %v524, 7
        %v526 = vsub.s32 0, %v525
        %v527 = vrot.slane %v522, %v526
        %529 = vmatprep.subr.mxu0 0.0
        %530 = vmatpush1.msra.mxu0 0.0
        %531 = vmatprep.subr.mxu0 0.0
        %532 = vmatpush1.msra.mxu0 0.0
        %533 = vmatprep.subr.mxu0 0.0
        %534 = vmatpush1.msra.mxu0 0.0
        %535 = vmatprep.subr.mxu0 0.0
        %536 = vmatpush1.msra.mxu0 0.0
        %537 = vmatprep.subr.mxu0 0.0
        %538 = vmatpush1.msra.mxu0 0.0
        %539 = vmatprep.subr.mxu0 0.0
        %540 = vmatpush1.msra.mxu0 0.0
        %541 = vmatprep.subr.mxu0 0.0
        %542 = vmatpush1.msra.mxu0 0.0
        %543 = vmatprep.subr.mxu0 0.0
        %544 = vmatpush1.msra.mxu0 0.0
        %545 = vmatprep.subr.mxu0 0.0
        %546 = vmatpush1.msra.mxu0 0.0
        %547 = vmatprep.subr.mxu0 0.0
        %548 = vmatpush1.msra.mxu0 0.0
        %549 = vmatprep.subr.mxu0 0.0
        %550 = vmatpush1.msra.mxu0 0.0
        %551 = vmatprep.subr.mxu0 0.0
        %552 = vmatpush1.msra.mxu0 0.0
        %553 = vmatprep.subr.mxu0 0.0
        %554 = vmatpush1.msra.mxu0 %v521
        %555 = vmatprep.subr.mxu0 0.0
        %556 = vmatpush1.msra.mxu0 %v520
        %557 = vmatprep.subr.mxu0 0.0
        %558 = vmatpush1.msra.mxu0 %v519
        %559 = vmatprep.subr.mxu0 0.0
        %560 = vmatpush1.msra.mxu0 %v518
        %561 = vmatprep.subr.mxu0 0.0
        %562 = vmatpush2.msra.mxu0 0.0
        %563 = vmatprep.subr.mxu0 0.0
        %564 = vmatpush2.msra.mxu0 0.0
        %565 = vmatprep.subr.mxu0 0.0
        %566 = vmatpush2.msra.mxu0 0.0
        %567 = vmatprep.subr.mxu0 0.0
        %568 = vmatpush2.msra.mxu0 0.0
        %569 = vmatprep.subr.mxu0 0.0
        %570 = vmatpush2.msra.mxu0 0.0
        %571 = vmatprep.subr.mxu0 0.0
        %572 = vmatpush2.msra.mxu0 0.0
        %573 = vmatprep.subr.mxu0 0.0
        %574 = vmatpush2.msra.mxu0 0.0
        %575 = vmatprep.subr.mxu0 0.0
        %576 = vmatpush2.msra.mxu0 0.0
        %577 = vmatprep.subr.mxu0 0.0
        %578 = vmatpush2.msra.mxu0 0.0
        %579 = vmatprep.subr.mxu0 0.0
        %580 = vmatpush2.msra.mxu0 0.0
        %581 = vmatprep.subr.mxu0 0.0
        %582 = vmatpush2.msra.mxu0 0.0
        %583 = vmatprep.subr.mxu0 0.0
        %584 = vmatpush2.msra.mxu0 0.0
        %585 = vmatprep.subr.mxu0 0.0
        %586 = vmatpush2.msra.mxu0 0.0
        %587 = vmatprep.subr.mxu0 0.0
        %588 = vmatpush2.msra.mxu0 0.0
        %589 = vmatprep.subr.mxu0 0.0
        %590 = vmatpush2.msra.mxu0 0.0
        %591 = vmatprep.subr.mxu0 0.0
        %592 = vmatpush2.msra.mxu0 0.0
        %593 = vmatprep.mubr.f32.mxu0 0.0
        %594 = vmatmul.mubr.f32.gmra.mxu0 %v445
        %v595 = vpop.f32.mrf.mxu0
        %v596 = vadd.f32 %v527, %v595
        %v597 = vpop.f32.mrf.mxu0
        %598 = vdwg.mxu0
        %599 = vst.msk [vmem:[%s423] sm:$0xff] %vm443, %v596
        %v600 = vld [vmem:[#allocation8] sm:$0xff]
        %v601 = vld [vmem:[#allocation8 + $0x8] sm:$0xff]
        %v602 = vld [vmem:[#allocation8 + $0x10] sm:$0xff]
        %v603 = vld [vmem:[#allocation8 + $0x18] sm:$0xff]
        %v604 = vld [vmem:[%s6] sm:$0x1]
        %v606 = vlaneseq
        %v607 = vshrl.u32 %v606, 7
        %v608 = vsub.s32 0, %v607
        %v609 = vrot.slane %v604, %v608
        %611 = vmatprep.subr.mxu0 0.0
        %612 = vmatpush1.msra.mxu0 0.0
        %613 = vmatprep.subr.mxu0 0.0
        %614 = vmatpush1.msra.mxu0 0.0
        %615 = vmatprep.subr.mxu0 0.0
        %616 = vmatpush1.msra.mxu0 0.0
        %617 = vmatprep.subr.mxu0 0.0
        %618 = vmatpush1.msra.mxu0 0.0
        %619 = vmatprep.subr.mxu0 0.0
        %620 = vmatpush1.msra.mxu0 0.0
        %621 = vmatprep.subr.mxu0 0.0
        %622 = vmatpush1.msra.mxu0 0.0
        %623 = vmatprep.subr.mxu0 0.0
        %624 = vmatpush1.msra.mxu0 0.0
        %625 = vmatprep.subr.mxu0 0.0
        %626 = vmatpush1.msra.mxu0 0.0
        %627 = vmatprep.subr.mxu0 0.0
        %628 = vmatpush1.msra.mxu0 0.0
        %629 = vmatprep.subr.mxu0 0.0
        %630 = vmatpush1.msra.mxu0 0.0
        %631 = vmatprep.subr.mxu0 0.0
        %632 = vmatpush1.msra.mxu0 0.0
        %633 = vmatprep.subr.mxu0 0.0
        %634 = vmatpush1.msra.mxu0 0.0
        %635 = vmatprep.subr.mxu0 0.0
        %636 = vmatpush1.msra.mxu0 %v603
        %637 = vmatprep.subr.mxu0 0.0
        %638 = vmatpush1.msra.mxu0 %v602
        %639 = vmatprep.subr.mxu0 0.0
        %640 = vmatpush1.msra.mxu0 %v601
        %641 = vmatprep.subr.mxu0 0.0
        %642 = vmatpush1.msra.mxu0 %v600
        %643 = vmatprep.subr.mxu0 0.0
        %644 = vmatpush2.msra.mxu0 0.0
        %645 = vmatprep.subr.mxu0 0.0
        %646 = vmatpush2.msra.mxu0 0.0
        %647 = vmatprep.subr.mxu0 0.0
        %648 = vmatpush2.msra.mxu0 0.0
        %649 = vmatprep.subr.mxu0 0.0
        %650 = vmatpush2.msra.mxu0 0.0
        %651 = vmatprep.subr.mxu0 0.0
        %652 = vmatpush2.msra.mxu0 0.0
        %653 = vmatprep.subr.mxu0 0.0
        %654 = vmatpush2.msra.mxu0 0.0
        %655 = vmatprep.subr.mxu0 0.0
        %656 = vmatpush2.msra.mxu0 0.0
        %657 = vmatprep.subr.mxu0 0.0
        %658 = vmatpush2.msra.mxu0 0.0
        %659 = vmatprep.subr.mxu0 0.0
        %660 = vmatpush2.msra.mxu0 0.0
        %661 = vmatprep.subr.mxu0 0.0
        %662 = vmatpush2.msra.mxu0 0.0
        %663 = vmatprep.subr.mxu0 0.0
        %664 = vmatpush2.msra.mxu0 0.0
        %665 = vmatprep.subr.mxu0 0.0
        %666 = vmatpush2.msra.mxu0 0.0
        %667 = vmatprep.subr.mxu0 0.0
        %668 = vmatpush2.msra.mxu0 0.0
        %669 = vmatprep.subr.mxu0 0.0
        %670 = vmatpush2.msra.mxu0 0.0
        %671 = vmatprep.subr.mxu0 0.0
        %672 = vmatpush2.msra.mxu0 0.0
        %673 = vmatprep.subr.mxu0 0.0
        %674 = vmatpush2.msra.mxu0 0.0
        %675 = vmatprep.mubr.f32.mxu0 0.0
        %676 = vmatmul.mubr.f32.gmra.mxu0 %v445
        %v677 = vpop.f32.mrf.mxu0
        %v678 = vadd.f32 %v609, %v677
        %v679 = vpop.f32.mrf.mxu0
        %680 = vdwg.mxu0
        %681 = vst.msk [vmem:[%s430] sm:$0xff] %vm443, %v678
        %s682 = sand.u32 %s208, 1
        %s683 = scalar_lea.sflag [#allocation4], %s682
        %s684 = sand.u32 %s208, 1
        %s685 = smul.addr %s684, 8
        %s686 = scalar_lea.vmem [#allocation10], %s685
        %s687 = sand.u32 %s32, 1
        %s688 = scalar_lea.sflag [#allocation12], %s687
        %s689 = sand.u32 %s236, 1
        %s690 = smul.addr %s689, 8
        %s691 = scalar_lea.vmem [#allocation11], %s690
        %s692 = sand.u32 %s32, 1
        %s693 = scalar_lea.sflag [#allocation12], %s692
        %s694 = sand.u32 %s264, 1
        %s695 = smul.addr %s694, 8
        %s696 = scalar_lea.vmem [#allocation13], %s695
        // Predicated region
        $region65: #{tpu_custom_call.1} parent=47 // pred_check
          %p697 = pneg %p218
        $region66: #{tpu_custom_call.1} parent=47 // pred_check_branch
          %699 = sbr.rel (%p697) target = $region68
        $region67: #{tpu_custom_call.1} parent=47 // pred_region
          %s701 = ssub.s32 128, 128
          %702 = vsyncadd %s683, %s701
          %s703 = sadd.s32 %s37, %s36
          %s704 = smul.addr %s703, 128
          %s705 = scalar_lea.hbm %s7, %s704
          %s707 = sshll.u32 %s686, 4
          %s708 = int_to_ptr.vmem [resolvable:$true] %s707
          %710 = dma.vmem_to_hbm [thread:$0]  %s708, 128, %s705, %s683
        $region68: #{tpu_custom_call.1} parent=47 // pred_fallthru
          _
        // Predicated region
        $region69: #{tpu_custom_call.1} parent=47 // pred_check
          %p711 = pneg %p246
        $region70: #{tpu_custom_call.1} parent=47 // pred_check_branch
          %713 = sbr.rel (%p711) target = $region72
        $region71: #{tpu_custom_call.1} parent=47 // pred_region
          %s715 = ssub.s32 128, 128
          %716 = vsyncadd %s688, %s715
          %s717 = sadd.s32 %s37, %s36
          %s718 = smul.addr %s717, 128
          %s719 = scalar_lea.hbm %s8, %s718
          %s721 = sshll.u32 %s691, 4
          %s722 = int_to_ptr.vmem [resolvable:$true] %s721
          %724 = dma.vmem_to_hbm [thread:$0]  %s722, 128, %s719, %s688
        $region72: #{tpu_custom_call.1} parent=47 // pred_fallthru
          _
        // Predicated region
        $region73: #{tpu_custom_call.1} parent=47 // pred_check
          %p725 = pneg %p274
        $region74: #{tpu_custom_call.1} parent=47 // pred_check_branch
          %727 = sbr.rel (%p725) target = $region76
        $region75: #{tpu_custom_call.1} parent=47 // pred_region
          %s729 = ssub.s32 128, 128
          %730 = vsyncadd %s693, %s729
          %s731 = sadd.s32 %s37, %s36
          %s732 = smul.addr %s731, 128
          %s733 = scalar_lea.hbm %s9, %s732
          %s735 = sshll.u32 %s696, 4
          %s736 = int_to_ptr.vmem [resolvable:$true] %s735
          %738 = dma.vmem_to_hbm [thread:$0]  %s736, 128, %s733, %s693
        $region76: #{tpu_custom_call.1} parent=47 // pred_fallthru
          _
      $region48: #{tpu_custom_call.1} parent=5 // pred_fallthru
        _
      %p739 = scmp.le.s32.totalorder 2, %s27
      // Predicated region
      $region77: #{tpu_custom_call.1} parent=5 // pred_check
        %p740 = pneg %p739
      $region78: #{tpu_custom_call.1} parent=5 // pred_check_branch
        %742 = sbr.rel (%p740) target = $region80
      $region79: #{tpu_custom_call.1} parent=5 // pred_region
        %s743 = ssub.s32 %s27, 2
        // Predicated region
        $region81: #{tpu_custom_call.1} parent=79 // pred_check
          %p744 = pneg %p224
        $region82: #{tpu_custom_call.1} parent=79 // pred_check_branch
          %746 = sbr.rel (%p744) target = $region84
        $region83: #{tpu_custom_call.1} parent=79 // pred_region
          %s747 = sand.u32 %s209, 1
          %s748 = scalar_lea.sflag [#allocation4], %s747
          %s749 = sand.u32 %s209, 1
          %s750 = smul.addr %s749, 8
          %s751 = scalar_lea.vmem [#allocation10], %s750
          %752 = dma.done %s748, 128
        $region84: #{tpu_custom_call.1} parent=79 // pred_fallthru
          _
        // Predicated region
        $region85: #{tpu_custom_call.1} parent=79 // pred_check
          %p753 = pneg %p252
        $region86: #{tpu_custom_call.1} parent=79 // pred_check_branch
          %755 = sbr.rel (%p753) target = $region88
        $region87: #{tpu_custom_call.1} parent=79 // pred_region
          %s756 = sand.u32 %s33, 1
          %s757 = scalar_lea.sflag [#allocation12], %s756
          %s758 = sand.u32 %s237, 1
          %s759 = smul.addr %s758, 8
          %s760 = scalar_lea.vmem [#allocation11], %s759
          %761 = dma.done %s757, 128
        $region88: #{tpu_custom_call.1} parent=79 // pred_fallthru
          _
        // Predicated region
        $region89: #{tpu_custom_call.1} parent=79 // pred_check
          %p762 = pneg %p280
        $region90: #{tpu_custom_call.1} parent=79 // pred_check_branch
          %764 = sbr.rel (%p762) target = $region92
        $region91: #{tpu_custom_call.1} parent=79 // pred_region
          %s765 = sand.u32 %s33, 1
          %s766 = scalar_lea.sflag [#allocation12], %s765
          %s767 = sand.u32 %s265, 1
          %s768 = smul.addr %s767, 8
          %s769 = scalar_lea.vmem [#allocation13], %s768
          %770 = dma.done %s766, 128
        $region92: #{tpu_custom_call.1} parent=79 // pred_fallthru
          _
      $region80: #{tpu_custom_call.1} parent=5 // pred_fallthru
        _
    $region6: #{tpu_custom_call.1} parent=1 // loop_footer
      %s31 = sadd.s32 1, %s27
    $region7: #{tpu_custom_call.1} parent=1 // loop_footer_branch
      %26 = sbr.rel target = $region3
    $region8: #{tpu_custom_call.1} parent=1 // loop_exit
      _
    %771 = vsyncpa [#allocation3], 1
    %s772 = scalar_lea.sflag [#allocation3], 1
    %773 = vsyncpa %s772, 1
    %774 = vsyncpa [#allocation6], 1
    %775 = vsyncpa [#allocation9], 1
    %776 = vsyncpa [#allocation4], 1
    %s777 = scalar_lea.sflag [#allocation4], 1
    %778 = vsyncpa %s777, 1
    %779 = vsyncpa [#allocation12], 1
    %s780 = scalar_lea.sflag [#allocation12], 1
    %781 = vsyncpa %s780, 1

</llo_original>
